<compile_context>
chip_gen: v7x
topology: tpu7x:2x2x1
jax: 0.10.0
libtpu: 0.0.40
codegen_flags: <defaults>
</compile_context>

<pallas_src>
import functools

import jax
import jax.numpy as jnp
from jax import lax
from jax.experimental import pallas as pl
from jax.experimental.pallas import tpu as pltpu

LEAKY_SLOPE = 0.1  # mmdet YOLOv3 ConvModule act: LeakyReLU(negative_slope=0.1)


def _round_up(x, m):
    return (x + m - 1) // m * m


def _yolo_level_kernel(x_ref, wb_ref, scale_ref, bias_ref, wp_ref, bp_ref,
                       out_ref, *, WP):
    """One (image, Cout-tile) step of one feature level.

    x_ref     : (1, P, Cin)    bf16, zero-padded image flattened over (H+2, W+2)
    wb_ref    : (9, Cin, TN)   bf16, 3x3 bridge conv weight, tap-major
    scale_ref : (1, TN)        f32,  folded BN scale  (gamma / sqrt(var + eps))
    bias_ref  : (1, TN)        f32,  folded BN bias   (beta - mean * scale)
    wp_ref    : (TN, A_pad)    bf16, 1x1 pred conv weight (A zero-padded to 128k)
    bp_ref    : (1, A_pad)     f32,  pred conv bias (zero-padded)
    out_ref   : (1, P, A_pad)  f32,  prediction map on the padded flat grid
    """
    j = pl.program_id(1)                      # Cout-tile index (reduction axis)

    x = x_ref[0].astype(jnp.float32)          # 32-bit so sublane rolls stay unpacked
    p = x.shape[0]
    tn = wb_ref.shape[-1]

    # 3x3 "same" conv as 9 accumulated MXU matmuls.  On the flattened padded
    # grid each tap is a constant offset d, realised with an XLU roll (no
    # strided W-slice copies).  Wrapped-around values only land on border
    # positions, which the wrapper discards.
    acc = jnp.zeros((p, tn), jnp.float32)
    for ky in range(3):
        for kx in range(3):
            k = ky * 3 + kx
            d = (ky - 1) * WP + (kx - 1)
            s = (-d) % p
            tap = x if s == 0 else pltpu.roll(x, s, axis=0)
            acc = acc + jnp.dot(tap.astype(jnp.bfloat16), wb_ref[k],
                                preferred_element_type=jnp.float32)
            # NOTE: for tiny Cin the 9 taps could be concatenated into one
            # (P, 9*Cin) slab for a single fat-K matmul; at production Cin
            # (128-512) the 9-matmul form above is the right shape.

    # Folded BatchNorm affine + LeakyReLU(0.1), kept in f32 on the VPU.
    y = acc * scale_ref[0] + bias_ref[0]
    y = jnp.where(y > 0.0, y, LEAKY_SLOPE * y)

    # 1x1 prediction conv over this Cout tile (bf16 operands, f32 accumulate),
    # accumulated across Cout tiles directly in the resident output block.
    contrib = jnp.dot(y.astype(jnp.bfloat16), wp_ref[...],
                      preferred_element_type=jnp.float32)

    @pl.when(j == 0)
    def _init():
        out_ref[0] = contrib + bp_ref[0]

    @pl.when(j > 0)
    def _accum():
        out_ref[0] = out_ref[0] + contrib


def yolo_head_level(x_nchw, w_bridge, bn_scale, bn_bias, w_pred, b_pred):
    """Run one YOLOv3 head level.

    x_nchw   : (N, Cin, H, W) float32
    w_bridge : (Cout, Cin, 3, 3) PyTorch conv layout (no bias; BN follows)
    bn_scale : (Cout,)  = gamma / sqrt(var + eps)
    bn_bias  : (Cout,)  = beta - mean * bn_scale
    w_pred   : (A, Cout, 1, 1) PyTorch conv layout, A = num_anchors * num_attrib
    b_pred   : (A,)
    returns  : (N, A, H, W) float32 prediction map (PyTorch NCHW convention)
    """
    N, Cin, H, W = x_nchw.shape
    Cout = w_bridge.shape[0]
    A = w_pred.shape[0]
    HP, WP = H + 2, W + 2
    P = HP * WP
    P_pad = _round_up(P, 8)          # sublane-align the flattened spatial axis
    A_pad = _round_up(A, 128)        # lane-dense prediction channels
    TN = Cout if Cout <= 256 else 256
    assert Cout % TN == 0, "Cout must be a multiple of the Cout tile"
    n_ct = Cout // TN

    # ---- wrapper-side layout plumbing (XLA): NCHW->NHWC, pad, flatten, cast ----
    x = jnp.transpose(x_nchw, (0, 2, 3, 1)).astype(jnp.float32)
    x = jnp.pad(x, ((0, 0), (1, 1), (1, 1), (0, 0))).reshape(N, P, Cin)
    x = jnp.pad(x, ((0, 0), (0, P_pad - P), (0, 0))).astype(jnp.bfloat16)

    wb = jnp.transpose(w_bridge, (2, 3, 1, 0))            # (3, 3, Cin, Cout)
    wb = wb.reshape(9, Cin, Cout).astype(jnp.bfloat16)    # tap-major
    scale2 = bn_scale.reshape(1, Cout).astype(jnp.float32)
    bias2 = bn_bias.reshape(1, Cout).astype(jnp.float32)
    wp = jnp.transpose(w_pred.reshape(A, Cout), (1, 0))   # (Cout, A)
    wp = jnp.pad(wp, ((0, 0), (0, A_pad - A))).astype(jnp.bfloat16)
    bp = jnp.pad(b_pred, (0, A_pad - A)).reshape(1, A_pad).astype(jnp.float32)

    kernel = functools.partial(_yolo_level_kernel, WP=WP)
    out_flat = pl.pallas_call(
        kernel,
        out_shape=jax.ShapeDtypeStruct((N, P_pad, A_pad), jnp.float32),
        grid_spec=pltpu.PrefetchScalarGridSpec(
            num_scalar_prefetch=0,
            grid=(N, n_ct),
            in_specs=[
                pl.BlockSpec((1, P_pad, Cin), lambda n, j: (n, 0, 0)),
                pl.BlockSpec((9, Cin, TN), lambda n, j: (0, 0, j)),
                pl.BlockSpec((1, TN), lambda n, j: (0, j)),
                pl.BlockSpec((1, TN), lambda n, j: (0, j)),
                pl.BlockSpec((TN, A_pad), lambda n, j: (j, 0)),
                pl.BlockSpec((1, A_pad), lambda n, j: (0, 0)),
            ],
            out_specs=pl.BlockSpec((1, P_pad, A_pad), lambda n, j: (n, 0, 0)),
        ),
        compiler_params=pltpu.CompilerParams(
            dimension_semantics=("parallel", "arbitrary")),
    )(x, wb, scale2, bias2, wp, bp)

    # Un-pad: keep valid flat positions, drop the conv border and the A padding.
    out = out_flat[:, :P, :A].reshape(N, HP, WP, A)[:, 1:H + 1, 1:W + 1, :]
    return jnp.transpose(out, (0, 3, 1, 2))               # back to NCHW


def yolo_head_forward(feats, params):
    """YOLOV3Head.forward prediction-map path: per-level bridge conv + pred conv."""
    pred_maps = []
    for x, p in zip(feats, params):
        pred_maps.append(
            yolo_head_level(x, p["w_bridge"], p["bn_scale"], p["bn_bias"],
                            p["w_pred"], p["b_pred"]))
    return tuple(pred_maps)


# ---------------------------- reference (pure JAX) ----------------------------
def _reference_level(x_nchw, w_bridge, bn_scale, bn_bias, w_pred, b_pred):
    """Reference emulating the kernel's bf16-storage / f32-accumulation scheme."""
    x = jnp.transpose(x_nchw, (0, 2, 3, 1)).astype(jnp.bfloat16).astype(jnp.float32)
    w_hwio = (jnp.transpose(w_bridge, (2, 3, 1, 0))
              .astype(jnp.bfloat16).astype(jnp.float32))
    y = lax.conv_general_dilated(x, w_hwio, window_strides=(1, 1), padding="SAME",
                                 dimension_numbers=("NHWC", "HWIO", "NHWC"))
    y = y * bn_scale + bn_bias
    y = jnp.where(y > 0, y, LEAKY_SLOPE * y)
    A, Cout = w_pred.shape[0], w_pred.shape[1]
    wp = w_pred.reshape(A, Cout).astype(jnp.bfloat16).astype(jnp.float32)
    yb = y.astype(jnp.bfloat16).astype(jnp.float32)
    pred = jnp.einsum("nhwc,ac->nhwa", yb, wp) + b_pred
    return jnp.transpose(pred, (0, 3, 1, 2))


# ----------------------------------- main -----------------------------------
if __name__ == "__main__":
    key = jax.random.PRNGKey(0)

    # Small synthetic config (module semantics: num_attrib = 5 + num_classes).
    num_classes = 3
    num_anchors = 3
    num_attrib = 5 + num_classes
    A = num_anchors * num_attrib              # 24 prediction channels
    batch = 2
    in_channels = [8, 16]
    out_channels = [16, 32]
    spatial = [8, 16]                         # H = W per level

    feats, params = [], []
    for cin, cout, hw in zip(in_channels, out_channels, spatial):
        key, k_x, k_wb, k_g, k_b, k_m, k_v, k_wp, k_bp = jax.random.split(key, 9)
        feats.append(jax.random.normal(k_x, (batch, cin, hw, hw), jnp.float32))

        # ConvModule: conv(3x3, no bias) + BN(affine) + LeakyReLU.
        w_bridge = jax.random.normal(k_wb, (cout, cin, 3, 3), jnp.float32) * 0.05
        gamma = 1.0 + 0.1 * jax.random.normal(k_g, (cout,), jnp.float32)
        beta = 0.1 * jax.random.normal(k_b, (cout,), jnp.float32)
        running_mean = 0.1 * jax.random.normal(k_m, (cout,), jnp.float32)
        running_var = jnp.abs(jax.random.normal(k_v, (cout,), jnp.float32)) + 1.0
        eps = 1e-5
        bn_scale = gamma / jnp.sqrt(running_var + eps)
        bn_bias = beta - running_mean * bn_scale

        # convs_pred: Conv2d(cout, A, 1) with normal_init(std=0.01), bias=0.
        w_pred = jax.random.normal(k_wp, (A, cout, 1, 1), jnp.float32) * 0.01
        b_pred = jnp.zeros((A,), jnp.float32)

        params.append(dict(w_bridge=w_bridge, bn_scale=bn_scale, bn_bias=bn_bias,
                           w_pred=w_pred, b_pred=b_pred))

    pred_maps = jax.block_until_ready(yolo_head_forward(feats, params))

    # Sanity: shapes and numerics vs. the bf16-matched pure-JAX reference.
    for lvl, pm in enumerate(pred_maps):
        assert pm.shape == (batch, A, spatial[lvl], spatial[lvl]), pm.shape
        ref = _reference_level(feats[lvl], params[lvl]["w_bridge"],
                               params[lvl]["bn_scale"], params[lvl]["bn_bias"],
                               params[lvl]["w_pred"], params[lvl]["b_pred"])
        err = jnp.max(jnp.abs(pm - ref))
        assert jnp.allclose(pm, ref, atol=3e-3, rtol=3e-3), (
            f"level {lvl} mismatch: max abs err {err}")

    print("KERNEL_OK")
</pallas_src>

<mosaic_0001>
module attributes {stable_mosaic.version = 11 : i64} {
  func.func @_yolo_level_kernel(%arg0: i32, %arg1: i32, %arg2: memref<1x104x8xbf16, #tpu.memory_space<vmem>>, %arg3: memref<9x8x16xbf16, #tpu.memory_space<vmem>>, %arg4: memref<1x16xf32, #tpu.memory_space<vmem>>, %arg5: memref<1x16xf32, #tpu.memory_space<vmem>>, %arg6: memref<16x128xbf16, #tpu.memory_space<vmem>>, %arg7: memref<1x128xf32, #tpu.memory_space<vmem>>, %arg8: memref<1x104x128xf32, #tpu.memory_space<vmem>>) attributes {dimension_semantics = [#tpu.dimension_semantics<parallel>, #tpu.dimension_semantics<arbitrary>], iteration_bounds = array<i64: 2, 1>, scalar_prefetch = 0 : i64, scratch_operands = 0 : i64, tpu.core_type = #tpu.core_type<tc>, window_params = [{transform_indices = @transform_0, window_bounds = array<i64: 1, 104, 8>}, {transform_indices = @transform_1, window_bounds = array<i64: 9, 8, 16>}, {transform_indices = @transform_2, window_bounds = array<i64: 1, 16>}, {transform_indices = @transform_3, window_bounds = array<i64: 1, 16>}, {transform_indices = @transform_4, window_bounds = array<i64: 16, 128>}, {pipeline_mode = #tpu.pipeline_mode<synchronous>, transform_indices = @transform_5, window_bounds = array<i64: 1, 128>}, {transform_indices = @transform_6, window_bounds = array<i64: 1, 104, 128>}]} {
    %c0 = arith.constant 0 : index
    %c0_0 = arith.constant 0 : index
    %c0_1 = arith.constant 0 : index
    %0 = vector.load %arg2[%c0, %c0_0, %c0_1] : memref<1x104x8xbf16, #tpu.memory_space<vmem>>, vector<1x104x8xbf16>
    %1 = vector.shape_cast %0 : vector<1x104x8xbf16> to vector<104x8xbf16>
    %2 = arith.extf %1 : vector<104x8xbf16> to vector<104x8xf32>
    %cst = arith.constant 0.000000e+00 : f32
    %3 = vector.broadcast %cst : f32 to vector<104x16xf32>
    %c11_i32 = arith.constant 11 : i32
    %4 = tpu.dynamic_rotate %2 by %c11_i32 dim 0 : vector<104x8xf32>, i32 -> vector<104x8xf32>
    %5 = arith.truncf %4 : vector<104x8xf32> to vector<104x8xbf16>
    %c0_2 = arith.constant 0 : index
    %c0_3 = arith.constant 0 : index
    %c0_4 = arith.constant 0 : index
    %6 = vector.load %arg3[%c0_2, %c0_3, %c0_4] : memref<9x8x16xbf16, #tpu.memory_space<vmem>>, vector<1x8x16xbf16>
    %7 = vector.shape_cast %6 : vector<1x8x16xbf16> to vector<8x16xbf16>
    %cst_5 = arith.constant dense<0.000000e+00> : vector<104x16xf32>
    %8 = tpu.matmul %5, %7, %cst_5 {dimension_numbers = #tpu.dot_dimension_numbers<[1], [0], [0], [1], [0, 0, 1, 1], [], []>} : vector<104x8xbf16>, vector<8x16xbf16>, vector<104x16xf32> -> vector<104x16xf32>
    %9 = arith.addf %3, %8 : vector<104x16xf32>
    %c10_i32 = arith.constant 10 : i32
    %10 = tpu.dynamic_rotate %2 by %c10_i32 dim 0 : vector<104x8xf32>, i32 -> vector<104x8xf32>
    %11 = arith.truncf %10 : vector<104x8xf32> to vector<104x8xbf16>
    %c1 = arith.constant 1 : index
    %c0_6 = arith.constant 0 : index
    %c0_7 = arith.constant 0 : index
    %12 = vector.load %arg3[%c1, %c0_6, %c0_7] : memref<9x8x16xbf16, #tpu.memory_space<vmem>>, vector<1x8x16xbf16>
    %13 = vector.shape_cast %12 : vector<1x8x16xbf16> to vector<8x16xbf16>
    %cst_8 = arith.constant dense<0.000000e+00> : vector<104x16xf32>
    %14 = tpu.matmul %11, %13, %cst_8 {dimension_numbers = #tpu.dot_dimension_numbers<[1], [0], [0], [1], [0, 0, 1, 1], [], []>} : vector<104x8xbf16>, vector<8x16xbf16>, vector<104x16xf32> -> vector<104x16xf32>
    %15 = arith.addf %9, %14 : vector<104x16xf32>
    %c9_i32 = arith.constant 9 : i32
    %16 = tpu.dynamic_rotate %2 by %c9_i32 dim 0 : vector<104x8xf32>, i32 -> vector<104x8xf32>
    %17 = arith.truncf %16 : vector<104x8xf32> to vector<104x8xbf16>
    %c2 = arith.constant 2 : index
    %c0_9 = arith.constant 0 : index
    %c0_10 = arith.constant 0 : index
    %18 = vector.load %arg3[%c2, %c0_9, %c0_10] : memref<9x8x16xbf16, #tpu.memory_space<vmem>>, vector<1x8x16xbf16>
    %19 = vector.shape_cast %18 : vector<1x8x16xbf16> to vector<8x16xbf16>
    %cst_11 = arith.constant dense<0.000000e+00> : vector<104x16xf32>
    %20 = tpu.matmul %17, %19, %cst_11 {dimension_numbers = #tpu.dot_dimension_numbers<[1], [0], [0], [1], [0, 0, 1, 1], [], []>} : vector<104x8xbf16>, vector<8x16xbf16>, vector<104x16xf32> -> vector<104x16xf32>
    %21 = arith.addf %15, %20 : vector<104x16xf32>
    %c1_i32 = arith.constant 1 : i32
    %22 = tpu.dynamic_rotate %2 by %c1_i32 dim 0 : vector<104x8xf32>, i32 -> vector<104x8xf32>
    %23 = arith.truncf %22 : vector<104x8xf32> to vector<104x8xbf16>
    %c3 = arith.constant 3 : index
    %c0_12 = arith.constant 0 : index
    %c0_13 = arith.constant 0 : index
    %24 = vector.load %arg3[%c3, %c0_12, %c0_13] : memref<9x8x16xbf16, #tpu.memory_space<vmem>>, vector<1x8x16xbf16>
    %25 = vector.shape_cast %24 : vector<1x8x16xbf16> to vector<8x16xbf16>
    %cst_14 = arith.constant dense<0.000000e+00> : vector<104x16xf32>
    %26 = tpu.matmul %23, %25, %cst_14 {dimension_numbers = #tpu.dot_dimension_numbers<[1], [0], [0], [1], [0, 0, 1, 1], [], []>} : vector<104x8xbf16>, vector<8x16xbf16>, vector<104x16xf32> -> vector<104x16xf32>
    %27 = arith.addf %21, %26 : vector<104x16xf32>
    %28 = arith.truncf %2 : vector<104x8xf32> to vector<104x8xbf16>
    %c4 = arith.constant 4 : index
    %c0_15 = arith.constant 0 : index
    %c0_16 = arith.constant 0 : index
    %29 = vector.load %arg3[%c4, %c0_15, %c0_16] : memref<9x8x16xbf16, #tpu.memory_space<vmem>>, vector<1x8x16xbf16>
    %30 = vector.shape_cast %29 : vector<1x8x16xbf16> to vector<8x16xbf16>
    %cst_17 = arith.constant dense<0.000000e+00> : vector<104x16xf32>
    %31 = tpu.matmul %28, %30, %cst_17 {dimension_numbers = #tpu.dot_dimension_numbers<[1], [0], [0], [1], [0, 0, 1, 1], [], []>} : vector<104x8xbf16>, vector<8x16xbf16>, vector<104x16xf32> -> vector<104x16xf32>
    %32 = arith.addf %27, %31 : vector<104x16xf32>
    %c103_i32 = arith.constant 103 : i32
    %33 = tpu.dynamic_rotate %2 by %c103_i32 dim 0 : vector<104x8xf32>, i32 -> vector<104x8xf32>
    %34 = arith.truncf %33 : vector<104x8xf32> to vector<104x8xbf16>
    %c5 = arith.constant 5 : index
    %c0_18 = arith.constant 0 : index
    %c0_19 = arith.constant 0 : index
    %35 = vector.load %arg3[%c5, %c0_18, %c0_19] : memref<9x8x16xbf16, #tpu.memory_space<vmem>>, vector<1x8x16xbf16>
    %36 = vector.shape_cast %35 : vector<1x8x16xbf16> to vector<8x16xbf16>
    %cst_20 = arith.constant dense<0.000000e+00> : vector<104x16xf32>
    %37 = tpu.matmul %34, %36, %cst_20 {dimension_numbers = #tpu.dot_dimension_numbers<[1], [0], [0], [1], [0, 0, 1, 1], [], []>} : vector<104x8xbf16>, vector<8x16xbf16>, vector<104x16xf32> -> vector<104x16xf32>
    %38 = arith.addf %32, %37 : vector<104x16xf32>
    %c95_i32 = arith.constant 95 : i32
    %39 = tpu.dynamic_rotate %2 by %c95_i32 dim 0 : vector<104x8xf32>, i32 -> vector<104x8xf32>
    %40 = arith.truncf %39 : vector<104x8xf32> to vector<104x8xbf16>
    %c6 = arith.constant 6 : index
    %c0_21 = arith.constant 0 : index
    %c0_22 = arith.constant 0 : index
    %41 = vector.load %arg3[%c6, %c0_21, %c0_22] : memref<9x8x16xbf16, #tpu.memory_space<vmem>>, vector<1x8x16xbf16>
    %42 = vector.shape_cast %41 : vector<1x8x16xbf16> to vector<8x16xbf16>
    %cst_23 = arith.constant dense<0.000000e+00> : vector<104x16xf32>
    %43 = tpu.matmul %40, %42, %cst_23 {dimension_numbers = #tpu.dot_dimension_numbers<[1], [0], [0], [1], [0, 0, 1, 1], [], []>} : vector<104x8xbf16>, vector<8x16xbf16>, vector<104x16xf32> -> vector<104x16xf32>
    %44 = arith.addf %38, %43 : vector<104x16xf32>
    %c94_i32 = arith.constant 94 : i32
    %45 = tpu.dynamic_rotate %2 by %c94_i32 dim 0 : vector<104x8xf32>, i32 -> vector<104x8xf32>
    %46 = arith.truncf %45 : vector<104x8xf32> to vector<104x8xbf16>
    %c7 = arith.constant 7 : index
    %c0_24 = arith.constant 0 : index
    %c0_25 = arith.constant 0 : index
    %47 = vector.load %arg3[%c7, %c0_24, %c0_25] : memref<9x8x16xbf16, #tpu.memory_space<vmem>>, vector<1x8x16xbf16>
    %48 = vector.shape_cast %47 : vector<1x8x16xbf16> to vector<8x16xbf16>
    %cst_26 = arith.constant dense<0.000000e+00> : vector<104x16xf32>
    %49 = tpu.matmul %46, %48, %cst_26 {dimension_numbers = #tpu.dot_dimension_numbers<[1], [0], [0], [1], [0, 0, 1, 1], [], []>} : vector<104x8xbf16>, vector<8x16xbf16>, vector<104x16xf32> -> vector<104x16xf32>
    %50 = arith.addf %44, %49 : vector<104x16xf32>
    %c93_i32 = arith.constant 93 : i32
    %51 = tpu.dynamic_rotate %2 by %c93_i32 dim 0 : vector<104x8xf32>, i32 -> vector<104x8xf32>
    %52 = arith.truncf %51 : vector<104x8xf32> to vector<104x8xbf16>
    %c8 = arith.constant 8 : index
    %c0_27 = arith.constant 0 : index
    %c0_28 = arith.constant 0 : index
    %53 = vector.load %arg3[%c8, %c0_27, %c0_28] : memref<9x8x16xbf16, #tpu.memory_space<vmem>>, vector<1x8x16xbf16>
    %54 = vector.shape_cast %53 : vector<1x8x16xbf16> to vector<8x16xbf16>
    %cst_29 = arith.constant dense<0.000000e+00> : vector<104x16xf32>
    %55 = tpu.matmul %52, %54, %cst_29 {dimension_numbers = #tpu.dot_dimension_numbers<[1], [0], [0], [1], [0, 0, 1, 1], [], []>} : vector<104x8xbf16>, vector<8x16xbf16>, vector<104x16xf32> -> vector<104x16xf32>
    %56 = arith.addf %50, %55 : vector<104x16xf32>
    %c0_30 = arith.constant 0 : index
    %c0_31 = arith.constant 0 : index
    %57 = vector.load %arg4[%c0_30, %c0_31] : memref<1x16xf32, #tpu.memory_space<vmem>>, vector<1x16xf32>
    %58 = vector.shape_cast %57 : vector<1x16xf32> to vector<16xf32>
    %59 = vector.shape_cast %58 : vector<16xf32> to vector<1x16xf32>
    %60 = vector.broadcast %59 : vector<1x16xf32> to vector<104x16xf32>
    %61 = arith.mulf %56, %60 : vector<104x16xf32>
    %c0_32 = arith.constant 0 : index
    %c0_33 = arith.constant 0 : index
    %62 = vector.load %arg5[%c0_32, %c0_33] : memref<1x16xf32, #tpu.memory_space<vmem>>, vector<1x16xf32>
    %63 = vector.shape_cast %62 : vector<1x16xf32> to vector<16xf32>
    %64 = vector.shape_cast %63 : vector<16xf32> to vector<1x16xf32>
    %65 = vector.broadcast %64 : vector<1x16xf32> to vector<104x16xf32>
    %66 = arith.addf %61, %65 : vector<104x16xf32>
    %cst_34 = arith.constant 0.000000e+00 : f32
    %67 = vector.broadcast %cst_34 : f32 to vector<104x16xf32>
    %68 = arith.cmpf ogt, %66, %67 : vector<104x16xf32>
    %cst_35 = arith.constant 1.000000e-01 : f32
    %69 = vector.broadcast %cst_35 : f32 to vector<104x16xf32>
    %70 = arith.mulf %69, %66 : vector<104x16xf32>
    %71 = arith.select %68, %66, %70 : vector<104x16xi1>, vector<104x16xf32>
    %72 = arith.truncf %71 : vector<104x16xf32> to vector<104x16xbf16>
    %c0_36 = arith.constant 0 : index
    %c0_37 = arith.constant 0 : index
    %73 = vector.load %arg6[%c0_36, %c0_37] : memref<16x128xbf16, #tpu.memory_space<vmem>>, vector<16x128xbf16>
    %cst_38 = arith.constant dense<0.000000e+00> : vector<104x128xf32>
    %74 = tpu.matmul %72, %73, %cst_38 {dimension_numbers = #tpu.dot_dimension_numbers<[1], [0], [0], [1], [0, 0, 1, 1], [], []>} : vector<104x16xbf16>, vector<16x128xbf16>, vector<104x128xf32> -> vector<104x128xf32>
    %c0_i32 = arith.constant 0 : i32
    %75 = arith.cmpi eq, %arg1, %c0_i32 : i32
    %76 = arith.extui %75 : i1 to i32
    %c0_i32_39 = arith.constant 0 : i32
    %77 = arith.cmpi ne, %76, %c0_i32_39 : i32
    scf.if %77 {
      %c0_42 = arith.constant 0 : index
      %c0_43 = arith.constant 0 : index
      %81 = vector.load %arg7[%c0_42, %c0_43] : memref<1x128xf32, #tpu.memory_space<vmem>>, vector<1x128xf32>
      %82 = vector.shape_cast %81 : vector<1x128xf32> to vector<128xf32>
      %83 = vector.shape_cast %82 : vector<128xf32> to vector<1x128xf32>
      %84 = vector.broadcast %83 : vector<1x128xf32> to vector<104x128xf32>
      %85 = arith.addf %74, %84 : vector<104x128xf32>
      %c0_44 = arith.constant 0 : index
      %c0_45 = arith.constant 0 : index
      %c0_46 = arith.constant 0 : index
      %86 = vector.load %arg8[%c0_44, %c0_45, %c0_46] : memref<1x104x128xf32, #tpu.memory_space<vmem>>, vector<1x104x128xf32>
      %87 = vector.shape_cast %86 : vector<1x104x128xf32> to vector<104x128xf32>
      %88 = vector.shape_cast %85 : vector<104x128xf32> to vector<1x104x128xf32>
      tpu.vector_store %arg8[%c0_44, %c0_45, %c0_46], %88 {strides = array<i32>} : memref<1x104x128xf32, #tpu.memory_space<vmem>>, vector<1x104x128xf32>,
    } else {
    }
    %c0_i32_40 = arith.constant 0 : i32
    %78 = arith.cmpi sgt, %arg1, %c0_i32_40 : i32
    %79 = arith.extui %78 : i1 to i32
    %c0_i32_41 = arith.constant 0 : i32
    %80 = arith.cmpi ne, %79, %c0_i32_41 : i32
    scf.if %80 {
      %c0_42 = arith.constant 0 : index
      %c0_43 = arith.constant 0 : index
      %c0_44 = arith.constant 0 : index
      %81 = vector.load %arg8[%c0_42, %c0_43, %c0_44] : memref<1x104x128xf32, #tpu.memory_space<vmem>>, vector<1x104x128xf32>
      %82 = vector.shape_cast %81 : vector<1x104x128xf32> to vector<104x128xf32>
      %83 = arith.addf %82, %74 : vector<104x128xf32>
      %c0_45 = arith.constant 0 : index
      %c0_46 = arith.constant 0 : index
      %c0_47 = arith.constant 0 : index
      %84 = vector.load %arg8[%c0_45, %c0_46, %c0_47] : memref<1x104x128xf32, #tpu.memory_space<vmem>>, vector<1x104x128xf32>
      %85 = vector.shape_cast %84 : vector<1x104x128xf32> to vector<104x128xf32>
      %86 = vector.shape_cast %83 : vector<104x128xf32> to vector<1x104x128xf32>
      tpu.vector_store %arg8[%c0_45, %c0_46, %c0_47], %86 {strides = array<i32>} : memref<1x104x128xf32, #tpu.memory_space<vmem>>, vector<1x104x128xf32>,
    } else {
    }
    return
  }
  func.func @transform_0(%arg0: i32, %arg1: i32) -> (i32, i32, i32) {
    %c0_i32 = arith.constant 0 : i32
    %c0_i32_0 = arith.constant 0 : i32
    %c0_i32_1 = arith.constant 0 : i32
    return %arg0, %c0_i32, %c0_i32_0 : i32, i32, i32
  }
  func.func @transform_1(%arg0: i32, %arg1: i32) -> (i32, i32, i32) {
    %c0_i32 = arith.constant 0 : i32
    %c0_i32_0 = arith.constant 0 : i32
    %c0_i32_1 = arith.constant 0 : i32
    return %c0_i32, %c0_i32_0, %arg1 : i32, i32, i32
  }
  func.func @transform_2(%arg0: i32, %arg1: i32) -> (i32, i32) {
    %c0_i32 = arith.constant 0 : i32
    %c0_i32_0 = arith.constant 0 : i32
    return %c0_i32, %arg1 : i32, i32
  }
  func.func @transform_3(%arg0: i32, %arg1: i32) -> (i32, i32) {
    %c0_i32 = arith.constant 0 : i32
    %c0_i32_0 = arith.constant 0 : i32
    return %c0_i32, %arg1 : i32, i32
  }
  func.func @transform_4(%arg0: i32, %arg1: i32) -> (i32, i32) {
    %c0_i32 = arith.constant 0 : i32
    %c0_i32_0 = arith.constant 0 : i32
    return %arg1, %c0_i32 : i32, i32
  }
  func.func @transform_5(%arg0: i32, %arg1: i32) -> (i32, i32) {
    %c0_i32 = arith.constant 0 : i32
    %c0_i32_0 = arith.constant 0 : i32
    %c0_i32_1 = arith.constant 0 : i32
    return %c0_i32, %c0_i32_0 : i32, i32
  }
  func.func @transform_6(%arg0: i32, %arg1: i32) -> (i32, i32, i32) {
    %c0_i32 = arith.constant 0 : i32
    %c0_i32_0 = arith.constant 0 : i32
    %c0_i32_1 = arith.constant 0 : i32
    return %arg0, %c0_i32, %c0_i32_0 : i32, i32, i32
  }
}

</mosaic_0001>

<llo_original>
// kernel: tpu_custom_call.1
$region0: #{tpu_custom_call.1}
  #allocation0 [shape = 'u32[]', space=smem, size = 0x4, offset = 0x4, fixed_abs, tag = 'smem constant byte address 0x4 - core index']
  #allocation1 [shape = 'u32[144,128]{1,0:T(1,128)}', space=vmem, size = 0x12000, scoped, tag = 'internal scratch']
  %s0 = inlined_call_operand.vmem [shape: bf16[2,104,8], index: 0, kind: input, shape index: {}]
  %s1 = inlined_call_operand.vmem [shape: bf16[9,8,16], index: 1, kind: input, shape index: {}]
  %s2 = inlined_call_operand.vmem [shape: f32[1,16], index: 2, kind: input, shape index: {}]
  %s3 = inlined_call_operand.vmem [shape: f32[1,16], index: 3, kind: input, shape index: {}]
  %s4 = inlined_call_operand.vmem [shape: bf16[16,128], index: 4, kind: input, shape index: {}]
  %s5 = inlined_call_operand.vmem [shape: f32[1,128], index: 5, kind: input, shape index: {}]
  %s6 = inlined_call_operand.hbm [shape: f32[2,104,128], index: 6, kind: output, shape index: {}]
  %s7 = sld [smem:[#allocation0]]
  $region65: #{tpu_custom_call.1} parent=0
    _
  %s9 = ssub.s32 1, %s7
  %s10 = scalar_select 0, %s9, %s7
  $region1: #{tpu_custom_call.1} parent=0
    #allocation2 [shape = 'u8[106496]{0}', space=vmem, size = 0x1a000, scoped, tag = 'output window, operand 0']
    #allocation3 [shape = 's32[2]{0}', space=sflag, size = 0x8, scoped, tag = 'scoped memory for tpu_custom_call.1']
    %11 = vsyncpa [#allocation3], 0
    %s12 = scalar_lea.sflag [#allocation3], 1
    %13 = vsyncpa %s12, 0
    loop: start=0, step=1, limit=4
    $region2: #{tpu_custom_call.1} parent=1 // loop_pre_header
      _
    $region3: #{tpu_custom_call.1} parent=1 // loop_header
      %s15 = sphi 0, %s19
      %p16 = scmp.ge.s32.totalorder %s15, 4
      %s22 = sphi 0, %s34
      %s23 = sphi 0, %s30
      %s24 = sphi 0, %s22
      %s25 = sphi 0, %s23
      %s26 = sphi 0, %s24
      %s27 = sphi 0, %s25
      %s37 = sphi 0, %s39
      %s40 = sphi 0, %s37
      %s41 = sphi 0, %s40
      %s57 = sphi 0, %s41
      %s63 = sphi 0, %s65
      %s66 = sphi 0, %s63
      %s67 = sphi 0, %s66
      %s83 = sphi 0, %s67
      %s89 = sphi 0, %s91
      %s92 = sphi 0, %s89
      %s93 = sphi 0, %s92
      %s109 = sphi 0, %s93
      %s115 = sphi 0, %s117
      %s118 = sphi 0, %s115
      %s119 = sphi 0, %s118
      %s135 = sphi 0, %s119
      %s141 = sphi 0, %s143
      %s144 = sphi 0, %s141
      %s145 = sphi 0, %s144
      %s161 = sphi 0, %s145
      %s165 = sphi 0, %s165
      %s167 = sphi 0, %s165
      %s168 = sphi 0, %s167
      %s182 = sphi 0, %s168
      %s188 = sphi 0, %s190
      %s191 = sphi 0, %s188
      %s192 = sphi 0, %s191
      %s208 = sphi 0, %s192
    $region4: #{tpu_custom_call.1} parent=1 // loop_header_branch
      %18 = sbr.rel (%p16) target = $region8
    $region5: #{tpu_custom_call.1} parent=1 // loop_body
      %s20 = ssub.s32 %s15, 1
      %s21 = ssub.s32 %s15, 2
      %s28 = sadd.s32 1, %s23
      %p29 = scmp.ge.s32.totalorder %s28, 1
      %s30 = scalar_select %p29, 0, %s28
      %s31 = sadd.s32 1, %s22
      %s32 = scalar_select %p29, %s31, %s22
      %p33 = scmp.ge.s32.totalorder %s32, 2
      %s34 = scalar_select %p33, 0, %s32
      %s35 = ssub.s32 %s22, %s34
      %p36 = scmp.eq.s32.totalorder %s35, 0
      %s38 = sadd.s32 %s37, 1
      %s39 = scalar_select %p36, %s37, %s38
      %p42 = pneg %p36
      %p43 = scmp.eq.s32.totalorder %s15, 1
      %p44 = por %p42, %p43
      %p45 = scmp.ne.s32.totalorder %s37, %s40
      %p46 = scmp.eq.s32.totalorder %s15, 0
      %p47 = por %p45, %p46
      %p48 = scmp.ne.s32.totalorder %s37, %s40
      %p49 = scmp.eq.s32.totalorder %s20, 1
      %p50 = por %p48, %p49
      %p51 = scmp.ne.s32.totalorder %s40, %s41
      %p52 = scmp.eq.s32.totalorder %s20, 0
      %p53 = por %p51, %p52
      %p54 = scmp.ne.s32.totalorder %s40, %s41
      %p55 = scmp.eq.s32.totalorder %s21, 1
      %p56 = por %p54, %p55
      %p58 = scmp.ne.s32.totalorder %s41, %s57
      %p59 = scmp.eq.s32.totalorder %s21, 0
      %p60 = por %p58, %p59
      %s61 = ssub.s32 %s23, %s30
      %p62 = scmp.eq.s32.totalorder %s61, 0
      %s64 = sadd.s32 %s63, 1
      %s65 = scalar_select %p62, %s63, %s64
      %p68 = pneg %p62
      %p69 = scmp.eq.s32.totalorder %s15, 1
      %p70 = por %p68, %p69
      %p71 = scmp.ne.s32.totalorder %s63, %s66
      %p72 = scmp.eq.s32.totalorder %s15, 0
      %p73 = por %p71, %p72
      %p74 = scmp.ne.s32.totalorder %s63, %s66
      %p75 = scmp.eq.s32.totalorder %s20, 1
      %p76 = por %p74, %p75
      %p77 = scmp.ne.s32.totalorder %s66, %s67
      %p78 = scmp.eq.s32.totalorder %s20, 0
      %p79 = por %p77, %p78
      %p80 = scmp.ne.s32.totalorder %s66, %s67
      %p81 = scmp.eq.s32.totalorder %s21, 1
      %p82 = por %p80, %p81
      %p84 = scmp.ne.s32.totalorder %s67, %s83
      %p85 = scmp.eq.s32.totalorder %s21, 0
      %p86 = por %p84, %p85
      %s87 = ssub.s32 %s23, %s30
      %p88 = scmp.eq.s32.totalorder %s87, 0
      %s90 = sadd.s32 %s89, 1
      %s91 = scalar_select %p88, %s89, %s90
      %p94 = pneg %p88
      %p95 = scmp.eq.s32.totalorder %s15, 1
      %p96 = por %p94, %p95
      %p97 = scmp.ne.s32.totalorder %s89, %s92
      %p98 = scmp.eq.s32.totalorder %s15, 0
      %p99 = por %p97, %p98
      %p100 = scmp.ne.s32.totalorder %s89, %s92
      %p101 = scmp.eq.s32.totalorder %s20, 1
      %p102 = por %p100, %p101
      %p103 = scmp.ne.s32.totalorder %s92, %s93
      %p104 = scmp.eq.s32.totalorder %s20, 0
      %p105 = por %p103, %p104
      %p106 = scmp.ne.s32.totalorder %s92, %s93
      %p107 = scmp.eq.s32.totalorder %s21, 1
      %p108 = por %p106, %p107
      %p110 = scmp.ne.s32.totalorder %s93, %s109
      %p111 = scmp.eq.s32.totalorder %s21, 0
      %p112 = por %p110, %p111
      %s113 = ssub.s32 %s23, %s30
      %p114 = scmp.eq.s32.totalorder %s113, 0
      %s116 = sadd.s32 %s115, 1
      %s117 = scalar_select %p114, %s115, %s116
      %p120 = pneg %p114
      %p121 = scmp.eq.s32.totalorder %s15, 1
      %p122 = por %p120, %p121
      %p123 = scmp.ne.s32.totalorder %s115, %s118
      %p124 = scmp.eq.s32.totalorder %s15, 0
      %p125 = por %p123, %p124
      %p126 = scmp.ne.s32.totalorder %s115, %s118
      %p127 = scmp.eq.s32.totalorder %s20, 1
      %p128 = por %p126, %p127
      %p129 = scmp.ne.s32.totalorder %s118, %s119
      %p130 = scmp.eq.s32.totalorder %s20, 0
      %p131 = por %p129, %p130
      %p132 = scmp.ne.s32.totalorder %s118, %s119
      %p133 = scmp.eq.s32.totalorder %s21, 1
      %p134 = por %p132, %p133
      %p136 = scmp.ne.s32.totalorder %s119, %s135
      %p137 = scmp.eq.s32.totalorder %s21, 0
      %p138 = por %p136, %p137
      %s139 = ssub.s32 %s23, %s30
      %p140 = scmp.eq.s32.totalorder %s139, 0
      %s142 = sadd.s32 %s141, 1
      %s143 = scalar_select %p140, %s141, %s142
      %p146 = pneg %p140
      %p147 = scmp.eq.s32.totalorder %s15, 1
      %p148 = por %p146, %p147
      %p149 = scmp.ne.s32.totalorder %s141, %s144
      %p150 = scmp.eq.s32.totalorder %s15, 0
      %p151 = por %p149, %p150
      %p152 = scmp.ne.s32.totalorder %s141, %s144
      %p153 = scmp.eq.s32.totalorder %s20, 1
      %p154 = por %p152, %p153
      %p155 = scmp.ne.s32.totalorder %s144, %s145
      %p156 = scmp.eq.s32.totalorder %s20, 0
      %p157 = por %p155, %p156
      %p158 = scmp.ne.s32.totalorder %s144, %s145
      %p159 = scmp.eq.s32.totalorder %s21, 1
      %p160 = por %p158, %p159
      %p162 = scmp.ne.s32.totalorder %s145, %s161
      %p163 = scmp.eq.s32.totalorder %s21, 0
      %p164 = por %p162, %p163
      %s166 = sadd.s32 %s165, 1
      %p169 = scmp.eq.s32.totalorder %s15, 1
      %p170 = scmp.ne.s32.totalorder %s165, %s167
      %p171 = scmp.eq.s32.totalorder %s15, 0
      %p172 = por %p170, %p171
      %p173 = scmp.ne.s32.totalorder %s165, %s167
      %p174 = scmp.eq.s32.totalorder %s20, 1
      %p175 = por %p173, %p174
      %p176 = scmp.ne.s32.totalorder %s167, %s168
      %p177 = scmp.eq.s32.totalorder %s20, 0
      %p178 = por %p176, %p177
      %p179 = scmp.ne.s32.totalorder %s167, %s168
      %p180 = scmp.eq.s32.totalorder %s21, 1
      %p181 = por %p179, %p180
      %p183 = scmp.ne.s32.totalorder %s168, %s182
      %p184 = scmp.eq.s32.totalorder %s21, 0
      %p185 = por %p183, %p184
      %s186 = ssub.s32 %s22, %s34
      %p187 = scmp.eq.s32.totalorder %s186, 0
      %s189 = sadd.s32 %s188, 1
      %s190 = scalar_select %p187, %s188, %s189
      %p193 = pneg %p187
      %p194 = scmp.eq.s32.totalorder %s15, 1
      %p195 = por %p193, %p194
      %p196 = scmp.ne.s32.totalorder %s188, %s191
      %p197 = scmp.eq.s32.totalorder %s15, 0
      %p198 = por %p196, %p197
      %p199 = scmp.ne.s32.totalorder %s188, %s191
      %p200 = scmp.eq.s32.totalorder %s20, 1
      %p201 = por %p199, %p200
      %p202 = scmp.ne.s32.totalorder %s191, %s192
      %p203 = scmp.eq.s32.totalorder %s20, 0
      %p204 = por %p202, %p203
      %p205 = scmp.ne.s32.totalorder %s191, %s192
      %p206 = scmp.eq.s32.totalorder %s21, 1
      %p207 = por %p205, %p206
      %p209 = scmp.ne.s32.totalorder %s192, %s208
      %p210 = scmp.eq.s32.totalorder %s21, 0
      %p211 = por %p209, %p210
      %p212 = scmp.le.s32.totalorder 1, %s15
      %p213 = scmp.lt.s32.totalorder %s15, 3
      %p214 = pnand %p212, %p213
      %p215 = pneg %p214
      // Predicated region
      $region9: #{tpu_custom_call.1} parent=5 // pred_check
        _
      $region10: #{tpu_custom_call.1} parent=5 // pred_check_branch
        %217 = sbr.rel (%p214) target = $region12
      $region11: #{tpu_custom_call.1} parent=5 // pred_region
        %s218 = ssub.s32 %s15, 1
        // Predicated region
        $region13: #{tpu_custom_call.1} parent=11 // pred_check
          %p219 = pneg %p79
        $region14: #{tpu_custom_call.1} parent=11 // pred_check_branch
          %221 = sbr.rel (%p219) target = $region16
        $region15: #{tpu_custom_call.1} parent=11 // pred_region
          %p222 = scmp.lt.s32.totalorder %s25, 0
          %s223 = scalar_select %p222, %s25, 0
          %s224 = smul.addr %s223, 4
          %s225 = scalar_lea.vmem %s1, %s224
        $region16: #{tpu_custom_call.1} parent=11 // pred_fallthru
          _
        // Predicated region
        $region17: #{tpu_custom_call.1} parent=11 // pred_check
          %p226 = pneg %p105
        $region18: #{tpu_custom_call.1} parent=11 // pred_check_branch
          %228 = sbr.rel (%p226) target = $region20
        $region19: #{tpu_custom_call.1} parent=11 // pred_region
          %p229 = scmp.lt.s32.totalorder %s25, 0
          %s230 = scalar_select %p229, %s25, 0
          %s231 = scalar_lea.vmem %s2, %s230
        $region20: #{tpu_custom_call.1} parent=11 // pred_fallthru
          _
        // Predicated region
        $region21: #{tpu_custom_call.1} parent=11 // pred_check
          %p232 = pneg %p131
        $region22: #{tpu_custom_call.1} parent=11 // pred_check_branch
          %234 = sbr.rel (%p232) target = $region24
        $region23: #{tpu_custom_call.1} parent=11 // pred_region
          %p235 = scmp.lt.s32.totalorder %s25, 0
          %s236 = scalar_select %p235, %s25, 0
          %s237 = scalar_lea.vmem %s3, %s236
        $region24: #{tpu_custom_call.1} parent=11 // pred_fallthru
          _
        // Predicated region
        $region25: #{tpu_custom_call.1} parent=11 // pred_check
          %p238 = pneg %p157
        $region26: #{tpu_custom_call.1} parent=11 // pred_check_branch
          %240 = sbr.rel (%p238) target = $region28
        $region27: #{tpu_custom_call.1} parent=11 // pred_region
          %s241 = smul.u32 2, %s25
          %p242 = scmp.lt.s32.totalorder %s241, 1
          %s243 = scalar_select %p242, %s241, 1
          %s244 = smul.addr %s243, 4
          %s245 = scalar_lea.vmem %s4, %s244
          %s246 = smul.u32 2, %s25
        $region28: #{tpu_custom_call.1} parent=11 // pred_fallthru
          _
        // Predicated region
        $region29: #{tpu_custom_call.1} parent=11 // pred_check
          %p247 = pneg %p178
        $region30: #{tpu_custom_call.1} parent=11 // pred_check_branch
          %249 = sbr.rel (%p247) target = $region32
        $region31: #{tpu_custom_call.1} parent=11 // pred_region
          _
        $region32: #{tpu_custom_call.1} parent=11 // pred_fallthru
          _
      $region12: #{tpu_custom_call.1} parent=5 // pred_fallthru
        _
      %p250 = scmp.lt.s32.totalorder %s15, 2
      // Predicated region
      $region33: #{tpu_custom_call.1} parent=5 // pred_check
        %p251 = pneg %p250
      $region34: #{tpu_custom_call.1} parent=5 // pred_check_branch
        %253 = sbr.rel (%p251) target = $region36
      $region35: #{tpu_custom_call.1} parent=5 // pred_region
        // Predicated region
        $region37: #{tpu_custom_call.1} parent=35 // pred_check
          %p254 = pneg %p47
        $region38: #{tpu_custom_call.1} parent=35 // pred_check_branch
          %256 = sbr.rel (%p254) target = $region40
        $region39: #{tpu_custom_call.1} parent=35 // pred_region
          %p257 = scmp.lt.s32.totalorder %s22, 1
          %s258 = scalar_select %p257, %s22, 1
          %s259 = smul.addr %s258, 13
          %s260 = smul.addr %s259, 4
          %s261 = scalar_lea.vmem %s0, %s260
        $region40: #{tpu_custom_call.1} parent=35 // pred_fallthru
          _
      $region36: #{tpu_custom_call.1} parent=5 // pred_fallthru
        _
      %p262 = scmp.le.s32.totalorder 1, %s15
      %p263 = scmp.lt.s32.totalorder %s15, 3
      %p264 = pnand %p262, %p263
      %p265 = pneg %p264
      // Predicated region
      $region41: #{tpu_custom_call.1} parent=5 // pred_check
        _
      $region42: #{tpu_custom_call.1} parent=5 // pred_check_branch
        %267 = sbr.rel (%p264) target = $region44
      $region43: #{tpu_custom_call.1} parent=5 // pred_region
        %s268 = ssub.s32 %s15, 1
        %p269 = scmp.lt.s32.totalorder %s24, 1
        %s270 = scalar_select %p269, %s24, 1
        %s271 = smul.addr %s270, 13
        %s272 = smul.addr %s271, 4
        %s273 = scalar_lea.vmem %s0, %s272
        %p274 = pneg %p53
        %p275 = pneg %p50
        %p276 = scmp.lt.s32.totalorder %s25, 0
        %s277 = scalar_select %p276, %s25, 0
        %s278 = smul.addr %s277, 4
        %s279 = scalar_lea.vmem %s1, %s278
        %p280 = pneg %p79
        %p281 = pneg %p76
        %p282 = scmp.lt.s32.totalorder %s25, 0
        %s283 = scalar_select %p282, %s25, 0
        %s284 = scalar_lea.vmem %s2, %s283
        %p285 = pneg %p105
        %p286 = pneg %p102
        %p287 = scmp.lt.s32.totalorder %s25, 0
        %s288 = scalar_select %p287, %s25, 0
        %s289 = scalar_lea.vmem %s3, %s288
        %p290 = pneg %p131
        %p291 = pneg %p128
        %s292 = smul.u32 2, %s25
        %p293 = scmp.lt.s32.totalorder %s292, 1
        %s294 = scalar_select %p293, %s292, 1
        %s295 = smul.addr %s294, 4
        %s296 = scalar_lea.vmem %s4, %s295
        %p297 = pneg %p157
        %p298 = pneg %p154
        %p299 = pneg %p178
        %p300 = pneg %p175
        %p301 = pneg %p204
        %p302 = pneg %p201
        %s303 = sand.u32 %s191, 1
        %s304 = scalar_lea.sflag [#allocation3], %s303
        %s305 = sand.u32 %s191, 1
        %s306 = smul.addr %s305, 104
        %s307 = scalar_lea.vmem [#allocation2], %s306
        %p308 = scmp.lt.s32.totalorder %s24, 1
        %s309 = scalar_select %p308, %s24, 1
        %s310 = smul.addr %s309, 13
        %s311 = smul.addr %s310, 4
        %s312 = scalar_lea.vmem %s0, %s311
        %p313 = scmp.lt.s32.totalorder %s25, 0
        %s314 = scalar_select %p313, %s25, 0
        %s315 = smul.addr %s314, 4
        %s316 = scalar_lea.vmem %s1, %s315
        %p317 = scmp.lt.s32.totalorder %s25, 0
        %s318 = scalar_select %p317, %s25, 0
        %s319 = scalar_lea.vmem %s2, %s318
        %p320 = scmp.lt.s32.totalorder %s25, 0
        %s321 = scalar_select %p320, %s25, 0
        %s322 = scalar_lea.vmem %s3, %s321
        %s323 = smul.u32 2, %s25
        %p324 = scmp.lt.s32.totalorder %s323, 1
        %s325 = scalar_select %p324, %s323, 1
        %s326 = smul.addr %s325, 4
        %s327 = scalar_lea.vmem %s4, %s326
        %s328 = smul.u32 2, %s25
        %v330 = vld [vmem:[%s312] sm:$0xf]
        %v331 = vld [vmem:[%s312 + $0x4] sm:$0xf]
        %v332 = vld [vmem:[%s312 + $0x8] sm:$0xf]
        %v333 = vld [vmem:[%s312 + $0xc] sm:$0xf]
        %v334 = vld [vmem:[%s312 + $0x10] sm:$0xf]
        %v335 = vld [vmem:[%s312 + $0x14] sm:$0xf]
        %v336 = vld [vmem:[%s312 + $0x18] sm:$0xf]
        %v337 = vld [vmem:[%s312 + $0x1c] sm:$0xf]
        %v338 = vld [vmem:[%s312 + $0x20] sm:$0xf]
        %v339 = vld [vmem:[%s312 + $0x24] sm:$0xf]
        %v340 = vld [vmem:[%s312 + $0x28] sm:$0xf]
        %v341 = vld [vmem:[%s312 + $0x2c] sm:$0xf]
        %v342 = vld [vmem:[%s312 + $0x30] sm:$0xf]
        %v343 = vunpack.c.l.bf16 %v330
        %v344 = vunpack.c.l.bf16 %v331
        %v345 = vunpack.c.l.bf16 %v332
        %v346 = vunpack.c.l.bf16 %v333
        %v347 = vunpack.c.l.bf16 %v334
        %v348 = vunpack.c.l.bf16 %v335
        %v349 = vunpack.c.l.bf16 %v336
        %v350 = vunpack.c.l.bf16 %v337
        %v351 = vunpack.c.l.bf16 %v338
        %v352 = vunpack.c.l.bf16 %v339
        %v353 = vunpack.c.l.bf16 %v340
        %v354 = vunpack.c.l.bf16 %v341
        %v355 = vunpack.c.l.bf16 %v342
        %v356 = vrot.slane %v343, 5
        %v357 = vrot.slane %v344, 5
        %v358 = vrot.slane %v345, 5
        %v359 = vrot.slane %v346, 5
        %v360 = vrot.slane %v347, 5
        %v361 = vrot.slane %v348, 5
        %v362 = vrot.slane %v349, 5
        %v363 = vrot.slane %v350, 5
        %v364 = vrot.slane %v351, 5
        %v365 = vrot.slane %v352, 5
        %v366 = vrot.slane %v353, 5
        %v367 = vrot.slane %v354, 5
        %v368 = vrot.slane %v355, 5
        %v369 = vlaneseq
        %v370 = vshrl.u32 %v369, 7
        %vm371 = vcmp.lt.s32.totalorder %v370, 3
        %v372 = vsel %vm371, %v367, %v368
        %v373 = vsel %vm371, %v366, %v367
        %v374 = vsel %vm371, %v365, %v366
        %v375 = vsel %vm371, %v364, %v365
        %v376 = vsel %vm371, %v363, %v364
        %v377 = vsel %vm371, %v362, %v363
        %v378 = vsel %vm371, %v361, %v362
        %v379 = vsel %vm371, %v360, %v361
        %v380 = vsel %vm371, %v359, %v360
        %v381 = vsel %vm371, %v358, %v359
        %v382 = vsel %vm371, %v357, %v358
        %v383 = vsel %vm371, %v356, %v357
        %v384 = vsel %vm371, %v368, %v356
        %v385 = vpack.c.bf16 %v384, %v372
        %v386 = vpack.c.bf16 %v382, %v383
        %v387 = vpack.c.bf16 %v380, %v381
        %v388 = vpack.c.bf16 %v378, %v379
        %v389 = vpack.c.bf16 %v376, %v377
        %v390 = vpack.c.bf16 %v374, %v375
        %v391 = vpack.c.bf16 %v373, %v373
        %v392 = vld [vmem:[%s316] sm:$0xf]
        %v393 = vrot.slane %v343, 6
        %v394 = vrot.slane %v344, 6
        %v395 = vrot.slane %v345, 6
        %v396 = vrot.slane %v346, 6
        %v397 = vrot.slane %v347, 6
        %v398 = vrot.slane %v348, 6
        %v399 = vrot.slane %v349, 6
        %v400 = vrot.slane %v350, 6
        %v401 = vrot.slane %v351, 6
        %v402 = vrot.slane %v352, 6
        %v403 = vrot.slane %v353, 6
        %v404 = vrot.slane %v354, 6
        %v405 = vrot.slane %v355, 6
        %vm406 = vcmp.lt.s32.totalorder %v370, 2
        %v407 = vsel %vm406, %v404, %v405
        %v408 = vsel %vm406, %v403, %v404
        %v409 = vsel %vm406, %v402, %v403
        %v410 = vsel %vm406, %v401, %v402
        %v411 = vsel %vm406, %v400, %v401
        %v412 = vsel %vm406, %v399, %v400
        %v413 = vsel %vm406, %v398, %v399
        %v414 = vsel %vm406, %v397, %v398
        %v415 = vsel %vm406, %v396, %v397
        %v416 = vsel %vm406, %v395, %v396
        %v417 = vsel %vm406, %v394, %v395
        %v418 = vsel %vm406, %v393, %v394
        %v419 = vsel %vm406, %v405, %v393
        %v420 = vpack.c.bf16 %v419, %v407
        %v421 = vpack.c.bf16 %v417, %v418
        %v422 = vpack.c.bf16 %v415, %v416
        %v423 = vpack.c.bf16 %v413, %v414
        %v424 = vpack.c.bf16 %v411, %v412
        %v425 = vpack.c.bf16 %v409, %v410
        %v426 = vpack.c.bf16 %v408, %v408
        %s427 = scalar_lea.vmem %s316, 4
        %v428 = vld [vmem:[%s427] sm:$0xf]
        %vm429 = vcmask 64512
        %v431 = vsel %vm429, %v420, 0
        %v434 = vsel %vm429, %v421, 0
        %v437 = vsel %vm429, %v422, 0
        %v440 = vsel %vm429, %v423, 0
        %v443 = vsel %vm429, %v424, 0
        %v446 = vsel %vm429, %v425, 0
        %v449 = vsel %vm429, %v426, 0
        %vm451 = vcmask 1043456
        %v453 = vsel %vm451, %v428, 0
        %455 = vmatprep.subr.bf16.mxu0 0
        %456 = vmatpush1.bf16.msra.mxu0 %v453
        %457 = vmatprep.subr.bf16.mxu0 0
        %458 = vmatpush1.bf16.msra.mxu0 0
        %459 = vmatprep.subr.bf16.mxu0 0
        %460 = vmatpush1.bf16.msra.mxu0 0
        %461 = vmatprep.subr.bf16.mxu0 0
        %462 = vmatpush1.bf16.msra.mxu0 0
        %463 = vmatprep.subr.bf16.mxu0 0
        %464 = vmatpush1.bf16.msra.mxu0 0
        %465 = vmatprep.subr.bf16.mxu0 0
        %466 = vmatpush1.bf16.msra.mxu0 0
        %467 = vmatprep.subr.bf16.mxu0 0
        %468 = vmatpush1.bf16.msra.mxu0 0
        %469 = vmatprep.subr.bf16.mxu0 0
        %470 = vmatpush1.bf16.msra.mxu0 0
        %471 = vmatprep.subr.bf16.mxu0 0
        %472 = vmatpush1.bf16.msra.mxu0 0
        %473 = vmatprep.subr.bf16.mxu0 0
        %474 = vmatpush1.bf16.msra.mxu0 0
        %475 = vmatprep.subr.bf16.mxu0 0
        %476 = vmatpush1.bf16.msra.mxu0 0
        %477 = vmatprep.subr.bf16.mxu0 0
        %478 = vmatpush1.bf16.msra.mxu0 0
        %479 = vmatprep.subr.bf16.mxu0 0
        %480 = vmatpush1.bf16.msra.mxu0 0
        %481 = vmatprep.subr.bf16.mxu0 0
        %482 = vmatpush1.bf16.msra.mxu0 0
        %483 = vmatprep.subr.bf16.mxu0 0
        %484 = vmatpush1.bf16.msra.mxu0 0
        %485 = vmatprep.subr.bf16.mxu0 0
        %486 = vmatpush1.bf16.msra.mxu0 0
        %487 = vmatprep.mubr.bf16.mxu0 0
        %488 = vmatmul.mubr.bf16.gmra.mrb[0].mxu0 %v431
        %v489 = vpop.f32.mrb[0].mxu0
        %v490 = vadd.f32 0.0, %v489
        %v491 = vpop.f32.mrb[0].mxu0
        %v492 = vpop.f32.mrb[0].mxu0
        %v493 = vadd.f32 0.0, %v492
        %v494 = vpop.f32.mrb[0].mxu0
        %495 = vmatprep.mubr.bf16.mxu0 0
        %496 = vmatmul.mubr.bf16.gmra.mrb[0].mxu0 %v434
        %v497 = vpop.f32.mrb[0].mxu0
        %v498 = vadd.f32 0.0, %v497
        %v499 = vpop.f32.mrb[0].mxu0
        %v500 = vpop.f32.mrb[0].mxu0
        %v501 = vadd.f32 0.0, %v500
        %v502 = vpop.f32.mrb[0].mxu0
        %503 = vmatprep.mubr.bf16.mxu0 0
        %504 = vmatmul.mubr.bf16.gmra.mrb[0].mxu0 %v437
        %v505 = vpop.f32.mrb[0].mxu0
        %v506 = vadd.f32 0.0, %v505
        %v507 = vpop.f32.mrb[0].mxu0
        %v508 = vpop.f32.mrb[0].mxu0
        %v509 = vadd.f32 0.0, %v508
        %v510 = vpop.f32.mrb[0].mxu0
        %511 = vmatprep.mubr.bf16.mxu0 0
        %512 = vmatmul.mubr.bf16.gmra.mrb[0].mxu0 %v440
        %v513 = vpop.f32.mrb[0].mxu0
        %v514 = vadd.f32 0.0, %v513
        %v515 = vpop.f32.mrb[0].mxu0
        %v516 = vpop.f32.mrb[0].mxu0
        %v517 = vadd.f32 0.0, %v516
        %v518 = vpop.f32.mrb[0].mxu0
        %519 = vmatprep.mubr.bf16.mxu0 0
        %520 = vmatmul.mubr.bf16.gmra.mrb[0].mxu0 %v443
        %v521 = vpop.f32.mrb[0].mxu0
        %v522 = vadd.f32 0.0, %v521
        %v523 = vpop.f32.mrb[0].mxu0
        %v524 = vpop.f32.mrb[0].mxu0
        %v525 = vadd.f32 0.0, %v524
        %v526 = vpop.f32.mrb[0].mxu0
        %527 = vmatprep.mubr.bf16.mxu0 0
        %528 = vmatmul.mubr.bf16.gmra.mrb[0].mxu0 %v446
        %v529 = vpop.f32.mrb[0].mxu0
        %v530 = vadd.f32 0.0, %v529
        %v531 = vpop.f32.mrb[0].mxu0
        %v532 = vpop.f32.mrb[0].mxu0
        %v533 = vadd.f32 0.0, %v532
        %v534 = vpop.f32.mrb[0].mxu0
        %535 = vmatprep.mubr.bf16.mxu0 0
        %536 = vmatmul.mubr.bf16.gmra.mrb[0].mxu0 %v449
        %v537 = vpop.f32.mrb[0].mxu0
        %v538 = vadd.f32 0.0, %v537
        %v539 = vpop.f32.mrb[0].mxu0
        %v540 = vpop.f32.mrb[0].mxu0
        %v541 = vpop.f32.mrb[0].mxu0
        %542 = vdwg.mxu0
        %v544 = vsel %vm429, %v385, 0
        %v547 = vsel %vm429, %v386, 0
        %v550 = vsel %vm429, %v387, 0
        %v553 = vsel %vm429, %v388, 0
        %v556 = vsel %vm429, %v389, 0
        %v559 = vsel %vm429, %v390, 0
        %v562 = vsel %vm429, %v391, 0
        %v565 = vsel %vm451, %v392, 0
        %567 = vmatprep.subr.bf16.mxu0 0
        %568 = vmatpush1.bf16.msra.mxu0 %v565
        %569 = vmatprep.subr.bf16.mxu0 0
        %570 = vmatpush1.bf16.msra.mxu0 0
        %571 = vmatprep.subr.bf16.mxu0 0
        %572 = vmatpush1.bf16.msra.mxu0 0
        %573 = vmatprep.subr.bf16.mxu0 0
        %574 = vmatpush1.bf16.msra.mxu0 0
        %575 = vmatprep.subr.bf16.mxu0 0
        %576 = vmatpush1.bf16.msra.mxu0 0
        %577 = vmatprep.subr.bf16.mxu0 0
        %578 = vmatpush1.bf16.msra.mxu0 0
        %579 = vmatprep.subr.bf16.mxu0 0
        %580 = vmatpush1.bf16.msra.mxu0 0
        %581 = vmatprep.subr.bf16.mxu0 0
        %582 = vmatpush1.bf16.msra.mxu0 0
        %583 = vmatprep.subr.bf16.mxu0 0
        %584 = vmatpush1.bf16.msra.mxu0 0
        %585 = vmatprep.subr.bf16.mxu0 0
        %586 = vmatpush1.bf16.msra.mxu0 0
        %587 = vmatprep.subr.bf16.mxu0 0
        %588 = vmatpush1.bf16.msra.mxu0 0
        %589 = vmatprep.subr.bf16.mxu0 0
        %590 = vmatpush1.bf16.msra.mxu0 0
        %591 = vmatprep.subr.bf16.mxu0 0
        %592 = vmatpush1.bf16.msra.mxu0 0
        %593 = vmatprep.subr.bf16.mxu0 0
        %594 = vmatpush1.bf16.msra.mxu0 0
        %595 = vmatprep.subr.bf16.mxu0 0
        %596 = vmatpush1.bf16.msra.mxu0 0
        %597 = vmatprep.subr.bf16.mxu0 0
        %598 = vmatpush1.bf16.msra.mxu0 0
        %599 = vmatprep.mubr.bf16.mxu0 0
        %600 = vmatmul.mubr.bf16.gmra.mrb[0].mxu0 %v544
        %v601 = vpop.f32.mrb[0].mxu0
        %v602 = vadd.f32 %v490, %v601
        %v603 = vpop.f32.mrb[0].mxu0
        %v604 = vpop.f32.mrb[0].mxu0
        %v605 = vadd.f32 %v493, %v604
        %v606 = vpop.f32.mrb[0].mxu0
        %607 = vmatprep.mubr.bf16.mxu0 0
        %608 = vmatmul.mubr.bf16.gmra.mrb[0].mxu0 %v547
        %v609 = vpop.f32.mrb[0].mxu0
        %v610 = vadd.f32 %v498, %v609
        %v611 = vpop.f32.mrb[0].mxu0
        %v612 = vpop.f32.mrb[0].mxu0
        %v613 = vadd.f32 %v501, %v612
        %v614 = vpop.f32.mrb[0].mxu0
        %615 = vmatprep.mubr.bf16.mxu0 0
        %616 = vmatmul.mubr.bf16.gmra.mrb[0].mxu0 %v550
        %v617 = vpop.f32.mrb[0].mxu0
        %v618 = vadd.f32 %v506, %v617
        %v619 = vpop.f32.mrb[0].mxu0
        %v620 = vpop.f32.mrb[0].mxu0
        %v621 = vadd.f32 %v509, %v620
        %v622 = vpop.f32.mrb[0].mxu0
        %623 = vmatprep.mubr.bf16.mxu0 0
        %624 = vmatmul.mubr.bf16.gmra.mrb[0].mxu0 %v553
        %v625 = vpop.f32.mrb[0].mxu0
        %v626 = vadd.f32 %v514, %v625
        %v627 = vpop.f32.mrb[0].mxu0
        %v628 = vpop.f32.mrb[0].mxu0
        %v629 = vadd.f32 %v517, %v628
        %v630 = vpop.f32.mrb[0].mxu0
        %631 = vmatprep.mubr.bf16.mxu0 0
        %632 = vmatmul.mubr.bf16.gmra.mrb[0].mxu0 %v556
        %v633 = vpop.f32.mrb[0].mxu0
        %v634 = vadd.f32 %v522, %v633
        %v635 = vpop.f32.mrb[0].mxu0
        %v636 = vpop.f32.mrb[0].mxu0
        %v637 = vadd.f32 %v525, %v636
        %v638 = vpop.f32.mrb[0].mxu0
        %639 = vmatprep.mubr.bf16.mxu0 0
        %640 = vmatmul.mubr.bf16.gmra.mrb[0].mxu0 %v559
        %v641 = vpop.f32.mrb[0].mxu0
        %v642 = vadd.f32 %v530, %v641
        %v643 = vpop.f32.mrb[0].mxu0
        %v644 = vpop.f32.mrb[0].mxu0
        %v645 = vadd.f32 %v533, %v644
        %v646 = vpop.f32.mrb[0].mxu0
        %647 = vmatprep.mubr.bf16.mxu0 0
        %648 = vmatmul.mubr.bf16.gmra.mrb[0].mxu0 %v562
        %v649 = vpop.f32.mrb[0].mxu0
        %v650 = vadd.f32 %v538, %v649
        %v651 = vpop.f32.mrb[0].mxu0
        %v652 = vpop.f32.mrb[0].mxu0
        %v653 = vpop.f32.mrb[0].mxu0
        %654 = vdwg.mxu0
        %v655 = vrot.slane %v343, 7
        %v656 = vrot.slane %v344, 7
        %v657 = vrot.slane %v345, 7
        %v658 = vrot.slane %v346, 7
        %v659 = vrot.slane %v347, 7
        %v660 = vrot.slane %v348, 7
        %v661 = vrot.slane %v349, 7
        %v662 = vrot.slane %v350, 7
        %v663 = vrot.slane %v351, 7
        %v664 = vrot.slane %v352, 7
        %v665 = vrot.slane %v353, 7
        %v666 = vrot.slane %v354, 7
        %v667 = vrot.slane %v355, 7
        %vm668 = vcmp.lt.s32.totalorder %v370, 1
        %v669 = vsel %vm668, %v666, %v667
        %v670 = vsel %vm668, %v665, %v666
        %v671 = vsel %vm668, %v664, %v665
        %v672 = vsel %vm668, %v663, %v664
        %v673 = vsel %vm668, %v662, %v663
        %v674 = vsel %vm668, %v661, %v662
        %v675 = vsel %vm668, %v660, %v661
        %v676 = vsel %vm668, %v659, %v660
        %v677 = vsel %vm668, %v658, %v659
        %v678 = vsel %vm668, %v657, %v658
        %v679 = vsel %vm668, %v656, %v657
        %v680 = vsel %vm668, %v655, %v656
        %v681 = vsel %vm668, %v667, %v655
        %v682 = vpack.c.bf16 %v681, %v669
        %v683 = vpack.c.bf16 %v679, %v680
        %v684 = vpack.c.bf16 %v677, %v678
        %v685 = vpack.c.bf16 %v675, %v676
        %v686 = vpack.c.bf16 %v673, %v674
        %v687 = vpack.c.bf16 %v671, %v672
        %v688 = vpack.c.bf16 %v670, %v670
        %s689 = scalar_lea.vmem %s316, 8
        %v690 = vld [vmem:[%s689] sm:$0xf]
        %v692 = vsel %vm429, %v682, 0
        %v695 = vsel %vm429, %v683, 0
        %v698 = vsel %vm429, %v684, 0
        %v701 = vsel %vm429, %v685, 0
        %v704 = vsel %vm429, %v686, 0
        %v707 = vsel %vm429, %v687, 0
        %v710 = vsel %vm429, %v688, 0
        %v713 = vsel %vm451, %v690, 0
        %715 = vmatprep.subr.bf16.mxu0 0
        %716 = vmatpush1.bf16.msra.mxu0 %v713
        %717 = vmatprep.subr.bf16.mxu0 0
        %718 = vmatpush1.bf16.msra.mxu0 0
        %719 = vmatprep.subr.bf16.mxu0 0
        %720 = vmatpush1.bf16.msra.mxu0 0
        %721 = vmatprep.subr.bf16.mxu0 0
        %722 = vmatpush1.bf16.msra.mxu0 0
        %723 = vmatprep.subr.bf16.mxu0 0
        %724 = vmatpush1.bf16.msra.mxu0 0
        %725 = vmatprep.subr.bf16.mxu0 0
        %726 = vmatpush1.bf16.msra.mxu0 0
        %727 = vmatprep.subr.bf16.mxu0 0
        %728 = vmatpush1.bf16.msra.mxu0 0
        %729 = vmatprep.subr.bf16.mxu0 0
        %730 = vmatpush1.bf16.msra.mxu0 0
        %731 = vmatprep.subr.bf16.mxu0 0
        %732 = vmatpush1.bf16.msra.mxu0 0
        %733 = vmatprep.subr.bf16.mxu0 0
        %734 = vmatpush1.bf16.msra.mxu0 0
        %735 = vmatprep.subr.bf16.mxu0 0
        %736 = vmatpush1.bf16.msra.mxu0 0
        %737 = vmatprep.subr.bf16.mxu0 0
        %738 = vmatpush1.bf16.msra.mxu0 0
        %739 = vmatprep.subr.bf16.mxu0 0
        %740 = vmatpush1.bf16.msra.mxu0 0
        %741 = vmatprep.subr.bf16.mxu0 0
        %742 = vmatpush1.bf16.msra.mxu0 0
        %743 = vmatprep.subr.bf16.mxu0 0
        %744 = vmatpush1.bf16.msra.mxu0 0
        %745 = vmatprep.subr.bf16.mxu0 0
        %746 = vmatpush1.bf16.msra.mxu0 0
        %747 = vmatprep.mubr.bf16.mxu0 0
        %748 = vmatmul.mubr.bf16.gmra.mrb[0].mxu0 %v692
        %v749 = vpop.f32.mrb[0].mxu0
        %v750 = vadd.f32 0.0, %v749
        %v751 = vpop.f32.mrb[0].mxu0
        %v752 = vpop.f32.mrb[0].mxu0
        %v753 = vadd.f32 0.0, %v752
        %v754 = vpop.f32.mrb[0].mxu0
        %755 = vmatprep.mubr.bf16.mxu0 0
        %756 = vmatmul.mubr.bf16.gmra.mrb[0].mxu0 %v695
        %v757 = vpop.f32.mrb[0].mxu0
        %v758 = vadd.f32 0.0, %v757
        %v759 = vpop.f32.mrb[0].mxu0
        %v760 = vpop.f32.mrb[0].mxu0
        %v761 = vadd.f32 0.0, %v760
        %v762 = vpop.f32.mrb[0].mxu0
        %763 = vmatprep.mubr.bf16.mxu0 0
        %764 = vmatmul.mubr.bf16.gmra.mrb[0].mxu0 %v698
        %v765 = vpop.f32.mrb[0].mxu0
        %v766 = vadd.f32 0.0, %v765
        %v767 = vpop.f32.mrb[0].mxu0
        %v768 = vpop.f32.mrb[0].mxu0
        %v769 = vadd.f32 0.0, %v768
        %v770 = vpop.f32.mrb[0].mxu0
        %771 = vmatprep.mubr.bf16.mxu0 0
        %772 = vmatmul.mubr.bf16.gmra.mrb[0].mxu0 %v701
        %v773 = vpop.f32.mrb[0].mxu0
        %v774 = vadd.f32 0.0, %v773
        %v775 = vpop.f32.mrb[0].mxu0
        %v776 = vpop.f32.mrb[0].mxu0
        %v777 = vadd.f32 0.0, %v776
        %v778 = vpop.f32.mrb[0].mxu0
        %779 = vmatprep.mubr.bf16.mxu0 0
        %780 = vmatmul.mubr.bf16.gmra.mrb[0].mxu0 %v704
        %v781 = vpop.f32.mrb[0].mxu0
        %v782 = vadd.f32 0.0, %v781
        %v783 = vpop.f32.mrb[0].mxu0
        %v784 = vpop.f32.mrb[0].mxu0
        %v785 = vadd.f32 0.0, %v784
        %v786 = vpop.f32.mrb[0].mxu0
        %787 = vmatprep.mubr.bf16.mxu0 0
        %788 = vmatmul.mubr.bf16.gmra.mrb[0].mxu0 %v707
        %v789 = vpop.f32.mrb[0].mxu0
        %v790 = vadd.f32 0.0, %v789
        %v791 = vpop.f32.mrb[0].mxu0
        %v792 = vpop.f32.mrb[0].mxu0
        %v793 = vadd.f32 0.0, %v792
        %v794 = vpop.f32.mrb[0].mxu0
        %795 = vmatprep.mubr.bf16.mxu0 0
        %796 = vmatmul.mubr.bf16.gmra.mrb[0].mxu0 %v710
        %v797 = vpop.f32.mrb[0].mxu0
        %v798 = vadd.f32 0.0, %v797
        %v799 = vpop.f32.mrb[0].mxu0
        %v800 = vpop.f32.mrb[0].mxu0
        %v801 = vpop.f32.mrb[0].mxu0
        %802 = vdwg.mxu0
        %v803 = vadd.f32 %v602, %v750
        %v804 = vadd.f32 %v605, %v753
        %v805 = vadd.f32 %v610, %v758
        %v806 = vadd.f32 %v613, %v761
        %v807 = vadd.f32 %v618, %v766
        %v808 = vadd.f32 %v621, %v769
        %v809 = vadd.f32 %v626, %v774
        %v810 = vadd.f32 %v629, %v777
        %v811 = vadd.f32 %v634, %v782
        %v812 = vadd.f32 %v637, %v785
        %v813 = vadd.f32 %v642, %v790
        %v814 = vadd.f32 %v645, %v793
        %v815 = vadd.f32 %v650, %v798
        %v816 = vpack.c.bf16 %v680, %v681
        %v817 = vpack.c.bf16 %v678, %v679
        %v818 = vpack.c.bf16 %v676, %v677
        %v819 = vpack.c.bf16 %v674, %v675
        %v820 = vpack.c.bf16 %v672, %v673
        %v821 = vpack.c.bf16 %v670, %v671
        %v822 = vpack.c.bf16 %v669, %v669
        %s823 = scalar_lea.vmem %s316, 12
        %v824 = vld [vmem:[%s823] sm:$0xf]
        %v826 = vsel %vm429, %v816, 0
        %v829 = vsel %vm429, %v817, 0
        %v832 = vsel %vm429, %v818, 0
        %v835 = vsel %vm429, %v819, 0
        %v838 = vsel %vm429, %v820, 0
        %v841 = vsel %vm429, %v821, 0
        %v844 = vsel %vm429, %v822, 0
        %v847 = vsel %vm451, %v824, 0
        %849 = vmatprep.subr.bf16.mxu0 0
        %850 = vmatpush1.bf16.msra.mxu0 %v847
        %851 = vmatprep.subr.bf16.mxu0 0
        %852 = vmatpush1.bf16.msra.mxu0 0
        %853 = vmatprep.subr.bf16.mxu0 0
        %854 = vmatpush1.bf16.msra.mxu0 0
        %855 = vmatprep.subr.bf16.mxu0 0
        %856 = vmatpush1.bf16.msra.mxu0 0
        %857 = vmatprep.subr.bf16.mxu0 0
        %858 = vmatpush1.bf16.msra.mxu0 0
        %859 = vmatprep.subr.bf16.mxu0 0
        %860 = vmatpush1.bf16.msra.mxu0 0
        %861 = vmatprep.subr.bf16.mxu0 0
        %862 = vmatpush1.bf16.msra.mxu0 0
        %863 = vmatprep.subr.bf16.mxu0 0
        %864 = vmatpush1.bf16.msra.mxu0 0
        %865 = vmatprep.subr.bf16.mxu0 0
        %866 = vmatpush1.bf16.msra.mxu0 0
        %867 = vmatprep.subr.bf16.mxu0 0
        %868 = vmatpush1.bf16.msra.mxu0 0
        %869 = vmatprep.subr.bf16.mxu0 0
        %870 = vmatpush1.bf16.msra.mxu0 0
        %871 = vmatprep.subr.bf16.mxu0 0
        %872 = vmatpush1.bf16.msra.mxu0 0
        %873 = vmatprep.subr.bf16.mxu0 0
        %874 = vmatpush1.bf16.msra.mxu0 0
        %875 = vmatprep.subr.bf16.mxu0 0
        %876 = vmatpush1.bf16.msra.mxu0 0
        %877 = vmatprep.subr.bf16.mxu0 0
        %878 = vmatpush1.bf16.msra.mxu0 0
        %879 = vmatprep.subr.bf16.mxu0 0
        %880 = vmatpush1.bf16.msra.mxu0 0
        %881 = vmatprep.mubr.bf16.mxu0 0
        %882 = vmatmul.mubr.bf16.gmra.mrb[0].mxu0 %v826
        %v883 = vpop.f32.mrb[0].mxu0
        %v884 = vadd.f32 0.0, %v883
        %v885 = vpop.f32.mrb[0].mxu0
        %v886 = vpop.f32.mrb[0].mxu0
        %v887 = vadd.f32 0.0, %v886
        %v888 = vpop.f32.mrb[0].mxu0
        %889 = vmatprep.mubr.bf16.mxu0 0
        %890 = vmatmul.mubr.bf16.gmra.mrb[0].mxu0 %v829
        %v891 = vpop.f32.mrb[0].mxu0
        %v892 = vadd.f32 0.0, %v891
        %v893 = vpop.f32.mrb[0].mxu0
        %v894 = vpop.f32.mrb[0].mxu0
        %v895 = vadd.f32 0.0, %v894
        %v896 = vpop.f32.mrb[0].mxu0
        %897 = vmatprep.mubr.bf16.mxu0 0
        %898 = vmatmul.mubr.bf16.gmra.mrb[0].mxu0 %v832
        %v899 = vpop.f32.mrb[0].mxu0
        %v900 = vadd.f32 0.0, %v899
        %v901 = vpop.f32.mrb[0].mxu0
        %v902 = vpop.f32.mrb[0].mxu0
        %v903 = vadd.f32 0.0, %v902
        %v904 = vpop.f32.mrb[0].mxu0
        %905 = vmatprep.mubr.bf16.mxu0 0
        %906 = vmatmul.mubr.bf16.gmra.mrb[0].mxu0 %v835
        %v907 = vpop.f32.mrb[0].mxu0
        %v908 = vadd.f32 0.0, %v907
        %v909 = vpop.f32.mrb[0].mxu0
        %v910 = vpop.f32.mrb[0].mxu0
        %v911 = vadd.f32 0.0, %v910
        %v912 = vpop.f32.mrb[0].mxu0
        %913 = vmatprep.mubr.bf16.mxu0 0
        %914 = vmatmul.mubr.bf16.gmra.mrb[0].mxu0 %v838
        %v915 = vpop.f32.mrb[0].mxu0
        %v916 = vadd.f32 0.0, %v915
        %v917 = vpop.f32.mrb[0].mxu0
        %v918 = vpop.f32.mrb[0].mxu0
        %v919 = vadd.f32 0.0, %v918
        %v920 = vpop.f32.mrb[0].mxu0
        %921 = vmatprep.mubr.bf16.mxu0 0
        %922 = vmatmul.mubr.bf16.gmra.mrb[0].mxu0 %v841
        %v923 = vpop.f32.mrb[0].mxu0
        %v924 = vadd.f32 0.0, %v923
        %v925 = vpop.f32.mrb[0].mxu0
        %v926 = vpop.f32.mrb[0].mxu0
        %v927 = vadd.f32 0.0, %v926
        %v928 = vpop.f32.mrb[0].mxu0
        %929 = vmatprep.mubr.bf16.mxu0 0
        %930 = vmatmul.mubr.bf16.gmra.mrb[0].mxu0 %v844
        %v931 = vpop.f32.mrb[0].mxu0
        %v932 = vadd.f32 0.0, %v931
        %v933 = vpop.f32.mrb[0].mxu0
        %v934 = vpop.f32.mrb[0].mxu0
        %v935 = vpop.f32.mrb[0].mxu0
        %936 = vdwg.mxu0
        %v937 = vadd.f32 %v803, %v884
        %v938 = vadd.f32 %v804, %v887
        %v939 = vadd.f32 %v805, %v892
        %v940 = vadd.f32 %v806, %v895
        %v941 = vadd.f32 %v807, %v900
        %v942 = vadd.f32 %v808, %v903
        %v943 = vadd.f32 %v809, %v908
        %v944 = vadd.f32 %v810, %v911
        %v945 = vadd.f32 %v811, %v916
        %v946 = vadd.f32 %v812, %v919
        %v947 = vadd.f32 %v813, %v924
        %v948 = vadd.f32 %v814, %v927
        %v949 = vadd.f32 %v815, %v932
        %s950 = scalar_lea.vmem %s316, 16
        %v951 = vld [vmem:[%s950] sm:$0xf]
        %v965 = vunpack.c.l.b16 %v330
        %v966 = vunpack.c.l.b16 %v331
        %v967 = vunpack.c.l.b16 %v332
        %v968 = vunpack.c.l.b16 %v333
        %v969 = vunpack.c.l.b16 %v334
        %v970 = vunpack.c.l.b16 %v335
        %v971 = vunpack.c.l.b16 %v336
        %v972 = vunpack.c.l.b16 %v337
        %v973 = vunpack.c.l.b16 %v338
        %v974 = vunpack.c.l.b16 %v339
        %v975 = vunpack.c.l.b16 %v340
        %v976 = vunpack.c.l.b16 %v341
        %v977 = vunpack.c.l.b16 %v342
        %v978 = vpack.c.b16 %v966, %v965
        %v979 = vpack.c.b16 %v968, %v967
        %v980 = vpack.c.b16 %v970, %v969
        %v981 = vpack.c.b16 %v972, %v971
        %v982 = vpack.c.b16 %v974, %v973
        %v983 = vpack.c.b16 %v976, %v975
        %v984 = vpack.c.b16 %v977, %v977
        %v986 = vsel %vm429, %v978, 0
        %v989 = vsel %vm429, %v979, 0
        %v992 = vsel %vm429, %v980, 0
        %v995 = vsel %vm429, %v981, 0
        %v998 = vsel %vm429, %v982, 0
        %v1001 = vsel %vm429, %v983, 0
        %v1004 = vsel %vm429, %v984, 0
        %v1007 = vsel %vm451, %v951, 0
        %1009 = vmatprep.subr.bf16.mxu0 0
        %1010 = vmatpush1.bf16.msra.mxu0 %v1007
        %1011 = vmatprep.subr.bf16.mxu0 0
        %1012 = vmatpush1.bf16.msra.mxu0 0
        %1013 = vmatprep.subr.bf16.mxu0 0
        %1014 = vmatpush1.bf16.msra.mxu0 0
        %1015 = vmatprep.subr.bf16.mxu0 0
        %1016 = vmatpush1.bf16.msra.mxu0 0
        %1017 = vmatprep.subr.bf16.mxu0 0
        %1018 = vmatpush1.bf16.msra.mxu0 0
        %1019 = vmatprep.subr.bf16.mxu0 0
        %1020 = vmatpush1.bf16.msra.mxu0 0
        %1021 = vmatprep.subr.bf16.mxu0 0
        %1022 = vmatpush1.bf16.msra.mxu0 0
        %1023 = vmatprep.subr.bf16.mxu0 0
        %1024 = vmatpush1.bf16.msra.mxu0 0
        %1025 = vmatprep.subr.bf16.mxu0 0
        %1026 = vmatpush1.bf16.msra.mxu0 0
        %1027 = vmatprep.subr.bf16.mxu0 0
        %1028 = vmatpush1.bf16.msra.mxu0 0
        %1029 = vmatprep.subr.bf16.mxu0 0
        %1030 = vmatpush1.bf16.msra.mxu0 0
        %1031 = vmatprep.subr.bf16.mxu0 0
        %1032 = vmatpush1.bf16.msra.mxu0 0
        %1033 = vmatprep.subr.bf16.mxu0 0
        %1034 = vmatpush1.bf16.msra.mxu0 0
        %1035 = vmatprep.subr.bf16.mxu0 0
        %1036 = vmatpush1.bf16.msra.mxu0 0
        %1037 = vmatprep.subr.bf16.mxu0 0
        %1038 = vmatpush1.bf16.msra.mxu0 0
        %1039 = vmatprep.subr.bf16.mxu0 0
        %1040 = vmatpush1.bf16.msra.mxu0 0
        %1041 = vmatprep.mubr.bf16.mxu0 0
        %1042 = vmatmul.mubr.bf16.gmra.mrb[0].mxu0 %v986
        %v1043 = vpop.f32.mrb[0].mxu0
        %v1044 = vadd.f32 0.0, %v1043
        %v1045 = vpop.f32.mrb[0].mxu0
        %v1046 = vpop.f32.mrb[0].mxu0
        %v1047 = vadd.f32 0.0, %v1046
        %v1048 = vpop.f32.mrb[0].mxu0
        %1049 = vmatprep.mubr.bf16.mxu0 0
        %1050 = vmatmul.mubr.bf16.gmra.mrb[0].mxu0 %v989
        %v1051 = vpop.f32.mrb[0].mxu0
        %v1052 = vadd.f32 0.0, %v1051
        %v1053 = vpop.f32.mrb[0].mxu0
        %v1054 = vpop.f32.mrb[0].mxu0
        %v1055 = vadd.f32 0.0, %v1054
        %v1056 = vpop.f32.mrb[0].mxu0
        %1057 = vmatprep.mubr.bf16.mxu0 0
        %1058 = vmatmul.mubr.bf16.gmra.mrb[0].mxu0 %v992
        %v1059 = vpop.f32.mrb[0].mxu0
        %v1060 = vadd.f32 0.0, %v1059
        %v1061 = vpop.f32.mrb[0].mxu0
        %v1062 = vpop.f32.mrb[0].mxu0
        %v1063 = vadd.f32 0.0, %v1062
        %v1064 = vpop.f32.mrb[0].mxu0
        %1065 = vmatprep.mubr.bf16.mxu0 0
        %1066 = vmatmul.mubr.bf16.gmra.mrb[0].mxu0 %v995
        %v1067 = vpop.f32.mrb[0].mxu0
        %v1068 = vadd.f32 0.0, %v1067
        %v1069 = vpop.f32.mrb[0].mxu0
        %v1070 = vpop.f32.mrb[0].mxu0
        %v1071 = vadd.f32 0.0, %v1070
        %v1072 = vpop.f32.mrb[0].mxu0
        %1073 = vmatprep.mubr.bf16.mxu0 0
        %1074 = vmatmul.mubr.bf16.gmra.mrb[0].mxu0 %v998
        %v1075 = vpop.f32.mrb[0].mxu0
        %v1076 = vadd.f32 0.0, %v1075
        %v1077 = vpop.f32.mrb[0].mxu0
        %v1078 = vpop.f32.mrb[0].mxu0
        %v1079 = vadd.f32 0.0, %v1078
        %v1080 = vpop.f32.mrb[0].mxu0
        %1081 = vmatprep.mubr.bf16.mxu0 0
        %1082 = vmatmul.mubr.bf16.gmra.mrb[0].mxu0 %v1001
        %v1083 = vpop.f32.mrb[0].mxu0
        %v1084 = vadd.f32 0.0, %v1083
        %v1085 = vpop.f32.mrb[0].mxu0
        %v1086 = vpop.f32.mrb[0].mxu0
        %v1087 = vadd.f32 0.0, %v1086
        %v1088 = vpop.f32.mrb[0].mxu0
        %1089 = vmatprep.mubr.bf16.mxu0 0
        %1090 = vmatmul.mubr.bf16.gmra.mrb[0].mxu0 %v1004
        %v1091 = vpop.f32.mrb[0].mxu0
        %v1092 = vadd.f32 0.0, %v1091
        %v1093 = vpop.f32.mrb[0].mxu0
        %v1094 = vpop.f32.mrb[0].mxu0
        %v1095 = vpop.f32.mrb[0].mxu0
        %1096 = vdwg.mxu0
        %v1097 = vadd.f32 %v937, %v1044
        %v1098 = vadd.f32 %v938, %v1047
        %v1099 = vadd.f32 %v939, %v1052
        %v1100 = vadd.f32 %v940, %v1055
        %v1101 = vadd.f32 %v941, %v1060
        %v1102 = vadd.f32 %v942, %v1063
        %v1103 = vadd.f32 %v943, %v1068
        %v1104 = vadd.f32 %v944, %v1071
        %v1105 = vadd.f32 %v945, %v1076
        %v1106 = vadd.f32 %v946, %v1079
        %v1107 = vadd.f32 %v947, %v1084
        %v1108 = vadd.f32 %v948, %v1087
        %v1109 = vadd.f32 %v949, %v1092
        %v1110 = vrot.slane %v343, 1
        %v1111 = vrot.slane %v344, 1
        %v1112 = vrot.slane %v345, 1
        %v1113 = vrot.slane %v346, 1
        %v1114 = vrot.slane %v347, 1
        %v1115 = vrot.slane %v348, 1
        %v1116 = vrot.slane %v349, 1
        %v1117 = vrot.slane %v350, 1
        %v1118 = vrot.slane %v351, 1
        %v1119 = vrot.slane %v352, 1
        %v1120 = vrot.slane %v353, 1
        %v1121 = vrot.slane %v354, 1
        %v1122 = vrot.slane %v355, 1
        %vm1123 = vcmp.lt.s32.totalorder %v370, 7
        %v1124 = vsel %vm1123, %v1121, %v1122
        %v1125 = vsel %vm1123, %v1120, %v1121
        %v1126 = vsel %vm1123, %v1119, %v1120
        %v1127 = vsel %vm1123, %v1118, %v1119
        %v1128 = vsel %vm1123, %v1117, %v1118
        %v1129 = vsel %vm1123, %v1116, %v1117
        %v1130 = vsel %vm1123, %v1115, %v1116
        %v1131 = vsel %vm1123, %v1114, %v1115
        %v1132 = vsel %vm1123, %v1113, %v1114
        %v1133 = vsel %vm1123, %v1112, %v1113
        %v1134 = vsel %vm1123, %v1111, %v1112
        %v1135 = vsel %vm1123, %v1110, %v1111
        %v1136 = vsel %vm1123, %v1122, %v1110
        %v1137 = vpack.c.bf16 %v1134, %v1135
        %v1138 = vpack.c.bf16 %v1132, %v1133
        %v1139 = vpack.c.bf16 %v1130, %v1131
        %v1140 = vpack.c.bf16 %v1128, %v1129
        %v1141 = vpack.c.bf16 %v1126, %v1127
        %v1142 = vpack.c.bf16 %v1124, %v1125
        %v1143 = vpack.c.bf16 %v1136, %v1136
        %s1144 = scalar_lea.vmem %s316, 20
        %v1145 = vld [vmem:[%s1144] sm:$0xf]
        %v1147 = vsel %vm429, %v1137, 0
        %v1150 = vsel %vm429, %v1138, 0
        %v1153 = vsel %vm429, %v1139, 0
        %v1156 = vsel %vm429, %v1140, 0
        %v1159 = vsel %vm429, %v1141, 0
        %v1162 = vsel %vm429, %v1142, 0
        %v1165 = vsel %vm429, %v1143, 0
        %v1168 = vsel %vm451, %v1145, 0
        %1170 = vmatprep.subr.bf16.mxu0 0
        %1171 = vmatpush1.bf16.msra.mxu0 %v1168
        %1172 = vmatprep.subr.bf16.mxu0 0
        %1173 = vmatpush1.bf16.msra.mxu0 0
        %1174 = vmatprep.subr.bf16.mxu0 0
        %1175 = vmatpush1.bf16.msra.mxu0 0
        %1176 = vmatprep.subr.bf16.mxu0 0
        %1177 = vmatpush1.bf16.msra.mxu0 0
        %1178 = vmatprep.subr.bf16.mxu0 0
        %1179 = vmatpush1.bf16.msra.mxu0 0
        %1180 = vmatprep.subr.bf16.mxu0 0
        %1181 = vmatpush1.bf16.msra.mxu0 0
        %1182 = vmatprep.subr.bf16.mxu0 0
        %1183 = vmatpush1.bf16.msra.mxu0 0
        %1184 = vmatprep.subr.bf16.mxu0 0
        %1185 = vmatpush1.bf16.msra.mxu0 0
        %1186 = vmatprep.subr.bf16.mxu0 0
        %1187 = vmatpush1.bf16.msra.mxu0 0
        %1188 = vmatprep.subr.bf16.mxu0 0
        %1189 = vmatpush1.bf16.msra.mxu0 0
        %1190 = vmatprep.subr.bf16.mxu0 0
        %1191 = vmatpush1.bf16.msra.mxu0 0
        %1192 = vmatprep.subr.bf16.mxu0 0
        %1193 = vmatpush1.bf16.msra.mxu0 0
        %1194 = vmatprep.subr.bf16.mxu0 0
        %1195 = vmatpush1.bf16.msra.mxu0 0
        %1196 = vmatprep.subr.bf16.mxu0 0
        %1197 = vmatpush1.bf16.msra.mxu0 0
        %1198 = vmatprep.subr.bf16.mxu0 0
        %1199 = vmatpush1.bf16.msra.mxu0 0
        %1200 = vmatprep.subr.bf16.mxu0 0
        %1201 = vmatpush1.bf16.msra.mxu0 0
        %1202 = vmatprep.mubr.bf16.mxu0 0
        %1203 = vmatmul.mubr.bf16.gmra.mrb[0].mxu0 %v1147
        %v1204 = vpop.f32.mrb[0].mxu0
        %v1205 = vadd.f32 0.0, %v1204
        %v1206 = vpop.f32.mrb[0].mxu0
        %v1207 = vpop.f32.mrb[0].mxu0
        %v1208 = vadd.f32 0.0, %v1207
        %v1209 = vpop.f32.mrb[0].mxu0
        %1210 = vmatprep.mubr.bf16.mxu0 0
        %1211 = vmatmul.mubr.bf16.gmra.mrb[0].mxu0 %v1150
        %v1212 = vpop.f32.mrb[0].mxu0
        %v1213 = vadd.f32 0.0, %v1212
        %v1214 = vpop.f32.mrb[0].mxu0
        %v1215 = vpop.f32.mrb[0].mxu0
        %v1216 = vadd.f32 0.0, %v1215
        %v1217 = vpop.f32.mrb[0].mxu0
        %1218 = vmatprep.mubr.bf16.mxu0 0
        %1219 = vmatmul.mubr.bf16.gmra.mrb[0].mxu0 %v1153
        %v1220 = vpop.f32.mrb[0].mxu0
        %v1221 = vadd.f32 0.0, %v1220
        %v1222 = vpop.f32.mrb[0].mxu0
        %v1223 = vpop.f32.mrb[0].mxu0
        %v1224 = vadd.f32 0.0, %v1223
        %v1225 = vpop.f32.mrb[0].mxu0
        %1226 = vmatprep.mubr.bf16.mxu0 0
        %1227 = vmatmul.mubr.bf16.gmra.mrb[0].mxu0 %v1156
        %v1228 = vpop.f32.mrb[0].mxu0
        %v1229 = vadd.f32 0.0, %v1228
        %v1230 = vpop.f32.mrb[0].mxu0
        %v1231 = vpop.f32.mrb[0].mxu0
        %v1232 = vadd.f32 0.0, %v1231
        %v1233 = vpop.f32.mrb[0].mxu0
        %1234 = vmatprep.mubr.bf16.mxu0 0
        %1235 = vmatmul.mubr.bf16.gmra.mrb[0].mxu0 %v1159
        %v1236 = vpop.f32.mrb[0].mxu0
        %v1237 = vadd.f32 0.0, %v1236
        %v1238 = vpop.f32.mrb[0].mxu0
        %v1239 = vpop.f32.mrb[0].mxu0
        %v1240 = vadd.f32 0.0, %v1239
        %v1241 = vpop.f32.mrb[0].mxu0
        %1242 = vmatprep.mubr.bf16.mxu0 0
        %1243 = vmatmul.mubr.bf16.gmra.mrb[0].mxu0 %v1162
        %v1244 = vpop.f32.mrb[0].mxu0
        %v1245 = vadd.f32 0.0, %v1244
        %v1246 = vpop.f32.mrb[0].mxu0
        %v1247 = vpop.f32.mrb[0].mxu0
        %v1248 = vadd.f32 0.0, %v1247
        %v1249 = vpop.f32.mrb[0].mxu0
        %1250 = vmatprep.mubr.bf16.mxu0 0
        %1251 = vmatmul.mubr.bf16.gmra.mrb[0].mxu0 %v1165
        %v1252 = vpop.f32.mrb[0].mxu0
        %v1253 = vadd.f32 0.0, %v1252
        %v1254 = vpop.f32.mrb[0].mxu0
        %v1255 = vpop.f32.mrb[0].mxu0
        %v1256 = vpop.f32.mrb[0].mxu0
        %1257 = vdwg.mxu0
        %v1258 = vadd.f32 %v1097, %v1205
        %v1259 = vadd.f32 %v1098, %v1208
        %v1260 = vadd.f32 %v1099, %v1213
        %v1261 = vadd.f32 %v1100, %v1216
        %v1262 = vadd.f32 %v1101, %v1221
        %v1263 = vadd.f32 %v1102, %v1224
        %v1264 = vadd.f32 %v1103, %v1229
        %v1265 = vadd.f32 %v1104, %v1232
        %v1266 = vadd.f32 %v1105, %v1237
        %v1267 = vadd.f32 %v1106, %v1240
        %v1268 = vadd.f32 %v1107, %v1245
        %v1269 = vadd.f32 %v1108, %v1248
        %v1270 = vadd.f32 %v1109, %v1253
        %v1271 = vpack.c.bf16 %v1133, %v1134
        %v1272 = vpack.c.bf16 %v1131, %v1132
        %v1273 = vpack.c.bf16 %v1129, %v1130
        %v1274 = vpack.c.bf16 %v1127, %v1128
        %v1275 = vpack.c.bf16 %v1125, %v1126
        %v1276 = vpack.c.bf16 %v1136, %v1124
        %v1277 = vpack.c.bf16 %v1135, %v1135
        %s1278 = scalar_lea.vmem %s316, 24
        %v1279 = vld [vmem:[%s1278] sm:$0xf]
        %v1281 = vsel %vm429, %v1271, 0
        %v1284 = vsel %vm429, %v1272, 0
        %v1287 = vsel %vm429, %v1273, 0
        %v1290 = vsel %vm429, %v1274, 0
        %v1293 = vsel %vm429, %v1275, 0
        %v1296 = vsel %vm429, %v1276, 0
        %v1299 = vsel %vm429, %v1277, 0
        %v1302 = vsel %vm451, %v1279, 0
        %1304 = vmatprep.subr.bf16.mxu0 0
        %1305 = vmatpush1.bf16.msra.mxu0 %v1302
        %1306 = vmatprep.subr.bf16.mxu0 0
        %1307 = vmatpush1.bf16.msra.mxu0 0
        %1308 = vmatprep.subr.bf16.mxu0 0
        %1309 = vmatpush1.bf16.msra.mxu0 0
        %1310 = vmatprep.subr.bf16.mxu0 0
        %1311 = vmatpush1.bf16.msra.mxu0 0
        %1312 = vmatprep.subr.bf16.mxu0 0
        %1313 = vmatpush1.bf16.msra.mxu0 0
        %1314 = vmatprep.subr.bf16.mxu0 0
        %1315 = vmatpush1.bf16.msra.mxu0 0
        %1316 = vmatprep.subr.bf16.mxu0 0
        %1317 = vmatpush1.bf16.msra.mxu0 0
        %1318 = vmatprep.subr.bf16.mxu0 0
        %1319 = vmatpush1.bf16.msra.mxu0 0
        %1320 = vmatprep.subr.bf16.mxu0 0
        %1321 = vmatpush1.bf16.msra.mxu0 0
        %1322 = vmatprep.subr.bf16.mxu0 0
        %1323 = vmatpush1.bf16.msra.mxu0 0
        %1324 = vmatprep.subr.bf16.mxu0 0
        %1325 = vmatpush1.bf16.msra.mxu0 0
        %1326 = vmatprep.subr.bf16.mxu0 0
        %1327 = vmatpush1.bf16.msra.mxu0 0
        %1328 = vmatprep.subr.bf16.mxu0 0
        %1329 = vmatpush1.bf16.msra.mxu0 0
        %1330 = vmatprep.subr.bf16.mxu0 0
        %1331 = vmatpush1.bf16.msra.mxu0 0
        %1332 = vmatprep.subr.bf16.mxu0 0
        %1333 = vmatpush1.bf16.msra.mxu0 0
        %1334 = vmatprep.subr.bf16.mxu0 0
        %1335 = vmatpush1.bf16.msra.mxu0 0
        %1336 = vmatprep.mubr.bf16.mxu0 0
        %1337 = vmatmul.mubr.bf16.gmra.mrb[0].mxu0 %v1281
        %v1338 = vpop.f32.mrb[0].mxu0
        %v1339 = vadd.f32 0.0, %v1338
        %v1340 = vpop.f32.mrb[0].mxu0
        %v1341 = vpop.f32.mrb[0].mxu0
        %v1342 = vadd.f32 0.0, %v1341
        %v1343 = vpop.f32.mrb[0].mxu0
        %1344 = vmatprep.mubr.bf16.mxu0 0
        %1345 = vmatmul.mubr.bf16.gmra.mrb[0].mxu0 %v1284
        %v1346 = vpop.f32.mrb[0].mxu0
        %v1347 = vadd.f32 0.0, %v1346
        %v1348 = vpop.f32.mrb[0].mxu0
        %v1349 = vpop.f32.mrb[0].mxu0
        %v1350 = vadd.f32 0.0, %v1349
        %v1351 = vpop.f32.mrb[0].mxu0
        %1352 = vmatprep.mubr.bf16.mxu0 0
        %1353 = vmatmul.mubr.bf16.gmra.mrb[0].mxu0 %v1287
        %v1354 = vpop.f32.mrb[0].mxu0
        %v1355 = vadd.f32 0.0, %v1354
        %v1356 = vpop.f32.mrb[0].mxu0
        %v1357 = vpop.f32.mrb[0].mxu0
        %v1358 = vadd.f32 0.0, %v1357
        %v1359 = vpop.f32.mrb[0].mxu0
        %1360 = vmatprep.mubr.bf16.mxu0 0
        %1361 = vmatmul.mubr.bf16.gmra.mrb[0].mxu0 %v1290
        %v1362 = vpop.f32.mrb[0].mxu0
        %v1363 = vadd.f32 0.0, %v1362
        %v1364 = vpop.f32.mrb[0].mxu0
        %v1365 = vpop.f32.mrb[0].mxu0
        %v1366 = vadd.f32 0.0, %v1365
        %v1367 = vpop.f32.mrb[0].mxu0
        %1368 = vmatprep.mubr.bf16.mxu0 0
        %1369 = vmatmul.mubr.bf16.gmra.mrb[0].mxu0 %v1293
        %v1370 = vpop.f32.mrb[0].mxu0
        %v1371 = vadd.f32 0.0, %v1370
        %v1372 = vpop.f32.mrb[0].mxu0
        %v1373 = vpop.f32.mrb[0].mxu0
        %v1374 = vadd.f32 0.0, %v1373
        %v1375 = vpop.f32.mrb[0].mxu0
        %1376 = vmatprep.mubr.bf16.mxu0 0
        %1377 = vmatmul.mubr.bf16.gmra.mrb[0].mxu0 %v1296
        %v1378 = vpop.f32.mrb[0].mxu0
        %v1379 = vadd.f32 0.0, %v1378
        %v1380 = vpop.f32.mrb[0].mxu0
        %v1381 = vpop.f32.mrb[0].mxu0
        %v1382 = vadd.f32 0.0, %v1381
        %v1383 = vpop.f32.mrb[0].mxu0
        %1384 = vmatprep.mubr.bf16.mxu0 0
        %1385 = vmatmul.mubr.bf16.gmra.mrb[0].mxu0 %v1299
        %v1386 = vpop.f32.mrb[0].mxu0
        %v1387 = vadd.f32 0.0, %v1386
        %v1388 = vpop.f32.mrb[0].mxu0
        %v1389 = vpop.f32.mrb[0].mxu0
        %v1390 = vpop.f32.mrb[0].mxu0
        %1391 = vdwg.mxu0
        %v1392 = vadd.f32 %v1258, %v1339
        %v1393 = vadd.f32 %v1259, %v1342
        %v1394 = vadd.f32 %v1260, %v1347
        %v1395 = vadd.f32 %v1261, %v1350
        %v1396 = vadd.f32 %v1262, %v1355
        %v1397 = vadd.f32 %v1263, %v1358
        %v1398 = vadd.f32 %v1264, %v1363
        %v1399 = vadd.f32 %v1265, %v1366
        %v1400 = vadd.f32 %v1266, %v1371
        %v1401 = vadd.f32 %v1267, %v1374
        %v1402 = vadd.f32 %v1268, %v1379
        %v1403 = vadd.f32 %v1269, %v1382
        %v1404 = vadd.f32 %v1270, %v1387
        %v1405 = vrot.slane %v343, 2
        %v1406 = vrot.slane %v344, 2
        %v1407 = vrot.slane %v345, 2
        %v1408 = vrot.slane %v346, 2
        %v1409 = vrot.slane %v347, 2
        %v1410 = vrot.slane %v348, 2
        %v1411 = vrot.slane %v349, 2
        %v1412 = vrot.slane %v350, 2
        %v1413 = vrot.slane %v351, 2
        %v1414 = vrot.slane %v352, 2
        %v1415 = vrot.slane %v353, 2
        %v1416 = vrot.slane %v354, 2
        %v1417 = vrot.slane %v355, 2
        %vm1418 = vcmp.lt.s32.totalorder %v370, 6
        %v1419 = vsel %vm1418, %v1416, %v1417
        %v1420 = vsel %vm1418, %v1415, %v1416
        %v1421 = vsel %vm1418, %v1414, %v1415
        %v1422 = vsel %vm1418, %v1413, %v1414
        %v1423 = vsel %vm1418, %v1412, %v1413
        %v1424 = vsel %vm1418, %v1411, %v1412
        %v1425 = vsel %vm1418, %v1410, %v1411
        %v1426 = vsel %vm1418, %v1409, %v1410
        %v1427 = vsel %vm1418, %v1408, %v1409
        %v1428 = vsel %vm1418, %v1407, %v1408
        %v1429 = vsel %vm1418, %v1406, %v1407
        %v1430 = vsel %vm1418, %v1405, %v1406
        %v1431 = vsel %vm1418, %v1417, %v1405
        %v1432 = vpack.c.bf16 %v1428, %v1429
        %v1433 = vpack.c.bf16 %v1426, %v1427
        %v1434 = vpack.c.bf16 %v1424, %v1425
        %v1435 = vpack.c.bf16 %v1422, %v1423
        %v1436 = vpack.c.bf16 %v1420, %v1421
        %v1437 = vpack.c.bf16 %v1431, %v1419
        %v1438 = vpack.c.bf16 %v1430, %v1430
        %s1439 = scalar_lea.vmem %s316, 28
        %v1440 = vld [vmem:[%s1439] sm:$0xf]
        %v1442 = vsel %vm429, %v1432, 0
        %v1445 = vsel %vm429, %v1433, 0
        %v1448 = vsel %vm429, %v1434, 0
        %v1451 = vsel %vm429, %v1435, 0
        %v1454 = vsel %vm429, %v1436, 0
        %v1457 = vsel %vm429, %v1437, 0
        %v1460 = vsel %vm429, %v1438, 0
        %v1463 = vsel %vm451, %v1440, 0
        %1465 = vmatprep.subr.bf16.mxu0 0
        %1466 = vmatpush1.bf16.msra.mxu0 %v1463
        %1467 = vmatprep.subr.bf16.mxu0 0
        %1468 = vmatpush1.bf16.msra.mxu0 0
        %1469 = vmatprep.subr.bf16.mxu0 0
        %1470 = vmatpush1.bf16.msra.mxu0 0
        %1471 = vmatprep.subr.bf16.mxu0 0
        %1472 = vmatpush1.bf16.msra.mxu0 0
        %1473 = vmatprep.subr.bf16.mxu0 0
        %1474 = vmatpush1.bf16.msra.mxu0 0
        %1475 = vmatprep.subr.bf16.mxu0 0
        %1476 = vmatpush1.bf16.msra.mxu0 0
        %1477 = vmatprep.subr.bf16.mxu0 0
        %1478 = vmatpush1.bf16.msra.mxu0 0
        %1479 = vmatprep.subr.bf16.mxu0 0
        %1480 = vmatpush1.bf16.msra.mxu0 0
        %1481 = vmatprep.subr.bf16.mxu0 0
        %1482 = vmatpush1.bf16.msra.mxu0 0
        %1483 = vmatprep.subr.bf16.mxu0 0
        %1484 = vmatpush1.bf16.msra.mxu0 0
        %1485 = vmatprep.subr.bf16.mxu0 0
        %1486 = vmatpush1.bf16.msra.mxu0 0
        %1487 = vmatprep.subr.bf16.mxu0 0
        %1488 = vmatpush1.bf16.msra.mxu0 0
        %1489 = vmatprep.subr.bf16.mxu0 0
        %1490 = vmatpush1.bf16.msra.mxu0 0
        %1491 = vmatprep.subr.bf16.mxu0 0
        %1492 = vmatpush1.bf16.msra.mxu0 0
        %1493 = vmatprep.subr.bf16.mxu0 0
        %1494 = vmatpush1.bf16.msra.mxu0 0
        %1495 = vmatprep.subr.bf16.mxu0 0
        %1496 = vmatpush1.bf16.msra.mxu0 0
        %1497 = vmatprep.mubr.bf16.mxu0 0
        %1498 = vmatmul.mubr.bf16.gmra.mrb[0].mxu0 %v1442
        %v1499 = vpop.f32.mrb[0].mxu0
        %v1500 = vadd.f32 0.0, %v1499
        %v1501 = vpop.f32.mrb[0].mxu0
        %v1502 = vpop.f32.mrb[0].mxu0
        %v1503 = vadd.f32 0.0, %v1502
        %v1504 = vpop.f32.mrb[0].mxu0
        %1505 = vmatprep.mubr.bf16.mxu0 0
        %1506 = vmatmul.mubr.bf16.gmra.mrb[0].mxu0 %v1445
        %v1507 = vpop.f32.mrb[0].mxu0
        %v1508 = vadd.f32 0.0, %v1507
        %v1509 = vpop.f32.mrb[0].mxu0
        %v1510 = vpop.f32.mrb[0].mxu0
        %v1511 = vadd.f32 0.0, %v1510
        %v1512 = vpop.f32.mrb[0].mxu0
        %1513 = vmatprep.mubr.bf16.mxu0 0
        %1514 = vmatmul.mubr.bf16.gmra.mrb[0].mxu0 %v1448
        %v1515 = vpop.f32.mrb[0].mxu0
        %v1516 = vadd.f32 0.0, %v1515
        %v1517 = vpop.f32.mrb[0].mxu0
        %v1518 = vpop.f32.mrb[0].mxu0
        %v1519 = vadd.f32 0.0, %v1518
        %v1520 = vpop.f32.mrb[0].mxu0
        %1521 = vmatprep.mubr.bf16.mxu0 0
        %1522 = vmatmul.mubr.bf16.gmra.mrb[0].mxu0 %v1451
        %v1523 = vpop.f32.mrb[0].mxu0
        %v1524 = vadd.f32 0.0, %v1523
        %v1525 = vpop.f32.mrb[0].mxu0
        %v1526 = vpop.f32.mrb[0].mxu0
        %v1527 = vadd.f32 0.0, %v1526
        %v1528 = vpop.f32.mrb[0].mxu0
        %1529 = vmatprep.mubr.bf16.mxu0 0
        %1530 = vmatmul.mubr.bf16.gmra.mrb[0].mxu0 %v1454
        %v1531 = vpop.f32.mrb[0].mxu0
        %v1532 = vadd.f32 0.0, %v1531
        %v1533 = vpop.f32.mrb[0].mxu0
        %v1534 = vpop.f32.mrb[0].mxu0
        %v1535 = vadd.f32 0.0, %v1534
        %v1536 = vpop.f32.mrb[0].mxu0
        %1537 = vmatprep.mubr.bf16.mxu0 0
        %1538 = vmatmul.mubr.bf16.gmra.mrb[0].mxu0 %v1457
        %v1539 = vpop.f32.mrb[0].mxu0
        %v1540 = vadd.f32 0.0, %v1539
        %v1541 = vpop.f32.mrb[0].mxu0
        %v1542 = vpop.f32.mrb[0].mxu0
        %v1543 = vadd.f32 0.0, %v1542
        %v1544 = vpop.f32.mrb[0].mxu0
        %1545 = vmatprep.mubr.bf16.mxu0 0
        %1546 = vmatmul.mubr.bf16.gmra.mrb[0].mxu0 %v1460
        %v1547 = vpop.f32.mrb[0].mxu0
        %v1548 = vadd.f32 0.0, %v1547
        %v1549 = vpop.f32.mrb[0].mxu0
        %v1550 = vpop.f32.mrb[0].mxu0
        %v1551 = vpop.f32.mrb[0].mxu0
        %1552 = vdwg.mxu0
        %v1553 = vadd.f32 %v1392, %v1500
        %v1554 = vadd.f32 %v1393, %v1503
        %v1555 = vadd.f32 %v1394, %v1508
        %v1556 = vadd.f32 %v1395, %v1511
        %v1557 = vadd.f32 %v1396, %v1516
        %v1558 = vadd.f32 %v1397, %v1519
        %v1559 = vadd.f32 %v1398, %v1524
        %v1560 = vadd.f32 %v1399, %v1527
        %v1561 = vadd.f32 %v1400, %v1532
        %v1562 = vadd.f32 %v1401, %v1535
        %v1563 = vadd.f32 %v1402, %v1540
        %v1564 = vadd.f32 %v1403, %v1543
        %v1565 = vadd.f32 %v1404, %v1548
        %v1566 = vrot.slane %v343, 3
        %v1567 = vrot.slane %v344, 3
        %v1568 = vrot.slane %v345, 3
        %v1569 = vrot.slane %v346, 3
        %v1570 = vrot.slane %v347, 3
        %v1571 = vrot.slane %v348, 3
        %v1572 = vrot.slane %v349, 3
        %v1573 = vrot.slane %v350, 3
        %v1574 = vrot.slane %v351, 3
        %v1575 = vrot.slane %v352, 3
        %v1576 = vrot.slane %v353, 3
        %v1577 = vrot.slane %v354, 3
        %v1578 = vrot.slane %v355, 3
        %vm1579 = vcmp.lt.s32.totalorder %v370, 5
        %v1580 = vsel %vm1579, %v1577, %v1578
        %v1581 = vsel %vm1579, %v1576, %v1577
        %v1582 = vsel %vm1579, %v1575, %v1576
        %v1583 = vsel %vm1579, %v1574, %v1575
        %v1584 = vsel %vm1579, %v1573, %v1574
        %v1585 = vsel %vm1579, %v1572, %v1573
        %v1586 = vsel %vm1579, %v1571, %v1572
        %v1587 = vsel %vm1579, %v1570, %v1571
        %v1588 = vsel %vm1579, %v1569, %v1570
        %v1589 = vsel %vm1579, %v1568, %v1569
        %v1590 = vsel %vm1579, %v1567, %v1568
        %v1591 = vsel %vm1579, %v1566, %v1567
        %v1592 = vsel %vm1579, %v1578, %v1566
        %v1593 = vpack.c.bf16 %v1589, %v1590
        %v1594 = vpack.c.bf16 %v1587, %v1588
        %v1595 = vpack.c.bf16 %v1585, %v1586
        %v1596 = vpack.c.bf16 %v1583, %v1584
        %v1597 = vpack.c.bf16 %v1581, %v1582
        %v1598 = vpack.c.bf16 %v1592, %v1580
        %v1599 = vpack.c.bf16 %v1591, %v1591
        %s1600 = scalar_lea.vmem %s316, 32
        %v1601 = vld [vmem:[%s1600] sm:$0xf]
        %v1603 = vsel %vm429, %v1593, 0
        %v1606 = vsel %vm429, %v1594, 0
        %v1609 = vsel %vm429, %v1595, 0
        %v1612 = vsel %vm429, %v1596, 0
        %v1615 = vsel %vm429, %v1597, 0
        %v1618 = vsel %vm429, %v1598, 0
        %v1621 = vsel %vm429, %v1599, 0
        %v1624 = vsel %vm451, %v1601, 0
        %1626 = vmatprep.subr.bf16.mxu0 0
        %1627 = vmatpush1.bf16.msra.mxu0 %v1624
        %1628 = vmatprep.subr.bf16.mxu0 0
        %1629 = vmatpush1.bf16.msra.mxu0 0
        %1630 = vmatprep.subr.bf16.mxu0 0
        %1631 = vmatpush1.bf16.msra.mxu0 0
        %1632 = vmatprep.subr.bf16.mxu0 0
        %1633 = vmatpush1.bf16.msra.mxu0 0
        %1634 = vmatprep.subr.bf16.mxu0 0
        %1635 = vmatpush1.bf16.msra.mxu0 0
        %1636 = vmatprep.subr.bf16.mxu0 0
        %1637 = vmatpush1.bf16.msra.mxu0 0
        %1638 = vmatprep.subr.bf16.mxu0 0
        %1639 = vmatpush1.bf16.msra.mxu0 0
        %1640 = vmatprep.subr.bf16.mxu0 0
        %1641 = vmatpush1.bf16.msra.mxu0 0
        %1642 = vmatprep.subr.bf16.mxu0 0
        %1643 = vmatpush1.bf16.msra.mxu0 0
        %1644 = vmatprep.subr.bf16.mxu0 0
        %1645 = vmatpush1.bf16.msra.mxu0 0
        %1646 = vmatprep.subr.bf16.mxu0 0
        %1647 = vmatpush1.bf16.msra.mxu0 0
        %1648 = vmatprep.subr.bf16.mxu0 0
        %1649 = vmatpush1.bf16.msra.mxu0 0
        %1650 = vmatprep.subr.bf16.mxu0 0
        %1651 = vmatpush1.bf16.msra.mxu0 0
        %1652 = vmatprep.subr.bf16.mxu0 0
        %1653 = vmatpush1.bf16.msra.mxu0 0
        %1654 = vmatprep.subr.bf16.mxu0 0
        %1655 = vmatpush1.bf16.msra.mxu0 0
        %1656 = vmatprep.subr.bf16.mxu0 0
        %1657 = vmatpush1.bf16.msra.mxu0 0
        %1658 = vmatprep.mubr.bf16.mxu0 0
        %1659 = vmatmul.mubr.bf16.gmra.mrb[0].mxu0 %v1603
        %v1660 = vpop.f32.mrb[0].mxu0
        %v1661 = vadd.f32 0.0, %v1660
        %v1662 = vpop.f32.mrb[0].mxu0
        %v1663 = vpop.f32.mrb[0].mxu0
        %v1664 = vadd.f32 0.0, %v1663
        %v1665 = vpop.f32.mrb[0].mxu0
        %1666 = vmatprep.mubr.bf16.mxu0 0
        %1667 = vmatmul.mubr.bf16.gmra.mrb[0].mxu0 %v1606
        %v1668 = vpop.f32.mrb[0].mxu0
        %v1669 = vadd.f32 0.0, %v1668
        %v1670 = vpop.f32.mrb[0].mxu0
        %v1671 = vpop.f32.mrb[0].mxu0
        %v1672 = vadd.f32 0.0, %v1671
        %v1673 = vpop.f32.mrb[0].mxu0
        %1674 = vmatprep.mubr.bf16.mxu0 0
        %1675 = vmatmul.mubr.bf16.gmra.mrb[0].mxu0 %v1609
        %v1676 = vpop.f32.mrb[0].mxu0
        %v1677 = vadd.f32 0.0, %v1676
        %v1678 = vpop.f32.mrb[0].mxu0
        %v1679 = vpop.f32.mrb[0].mxu0
        %v1680 = vadd.f32 0.0, %v1679
        %v1681 = vpop.f32.mrb[0].mxu0
        %1682 = vmatprep.mubr.bf16.mxu0 0
        %1683 = vmatmul.mubr.bf16.gmra.mrb[0].mxu0 %v1612
        %v1684 = vpop.f32.mrb[0].mxu0
        %v1685 = vadd.f32 0.0, %v1684
        %v1686 = vpop.f32.mrb[0].mxu0
        %v1687 = vpop.f32.mrb[0].mxu0
        %v1688 = vadd.f32 0.0, %v1687
        %v1689 = vpop.f32.mrb[0].mxu0
        %1690 = vmatprep.mubr.bf16.mxu0 0
        %1691 = vmatmul.mubr.bf16.gmra.mrb[0].mxu0 %v1615
        %v1692 = vpop.f32.mrb[0].mxu0
        %v1693 = vadd.f32 0.0, %v1692
        %v1694 = vpop.f32.mrb[0].mxu0
        %v1695 = vpop.f32.mrb[0].mxu0
        %v1696 = vadd.f32 0.0, %v1695
        %v1697 = vpop.f32.mrb[0].mxu0
        %1698 = vmatprep.mubr.bf16.mxu0 0
        %1699 = vmatmul.mubr.bf16.gmra.mrb[0].mxu0 %v1618
        %v1700 = vpop.f32.mrb[0].mxu0
        %v1701 = vadd.f32 0.0, %v1700
        %v1702 = vpop.f32.mrb[0].mxu0
        %v1703 = vpop.f32.mrb[0].mxu0
        %v1704 = vadd.f32 0.0, %v1703
        %v1705 = vpop.f32.mrb[0].mxu0
        %1706 = vmatprep.mubr.bf16.mxu0 0
        %1707 = vmatmul.mubr.bf16.gmra.mrb[0].mxu0 %v1621
        %v1708 = vpop.f32.mrb[0].mxu0
        %v1709 = vadd.f32 0.0, %v1708
        %v1710 = vpop.f32.mrb[0].mxu0
        %v1711 = vpop.f32.mrb[0].mxu0
        %v1712 = vpop.f32.mrb[0].mxu0
        %1713 = vdwg.mxu0
        %v1714 = vadd.f32 %v1553, %v1661
        %v1715 = vadd.f32 %v1554, %v1664
        %v1716 = vadd.f32 %v1555, %v1669
        %v1717 = vadd.f32 %v1556, %v1672
        %v1718 = vadd.f32 %v1557, %v1677
        %v1719 = vadd.f32 %v1558, %v1680
        %v1720 = vadd.f32 %v1559, %v1685
        %v1721 = vadd.f32 %v1560, %v1688
        %v1722 = vadd.f32 %v1561, %v1693
        %v1723 = vadd.f32 %v1562, %v1696
        %v1724 = vadd.f32 %v1563, %v1701
        %v1725 = vadd.f32 %v1564, %v1704
        %v1726 = vadd.f32 %v1565, %v1709
        %v1727 = vld [vmem:[%s319] sm:$0x1]
        %v1729 = vlaneseq
        %v1730 = vshrl.u32 %v1729, 7
        %v1731 = vsub.s32 0, %v1730
        %v1732 = vrot.slane %v1727, %v1731
        %v1734 = vmul.f32 %v1714, %v1732
        %v1735 = vmul.f32 %v1715, %v1732
        %v1736 = vmul.f32 %v1716, %v1732
        %v1737 = vmul.f32 %v1717, %v1732
        %v1738 = vmul.f32 %v1718, %v1732
        %v1739 = vmul.f32 %v1719, %v1732
        %v1740 = vmul.f32 %v1720, %v1732
        %v1741 = vmul.f32 %v1721, %v1732
        %v1742 = vmul.f32 %v1722, %v1732
        %v1743 = vmul.f32 %v1723, %v1732
        %v1744 = vmul.f32 %v1724, %v1732
        %v1745 = vmul.f32 %v1725, %v1732
        %v1746 = vmul.f32 %v1726, %v1732
        %v1747 = vld [vmem:[%s322] sm:$0x1]
        %v1749 = vlaneseq
        %v1750 = vshrl.u32 %v1749, 7
        %v1751 = vsub.s32 0, %v1750
        %v1752 = vrot.slane %v1747, %v1751
        %v1754 = vadd.f32 %v1734, %v1752
        %v1755 = vadd.f32 %v1735, %v1752
        %v1756 = vadd.f32 %v1736, %v1752
        %v1757 = vadd.f32 %v1737, %v1752
        %v1758 = vadd.f32 %v1738, %v1752
        %v1759 = vadd.f32 %v1739, %v1752
        %v1760 = vadd.f32 %v1740, %v1752
        %v1761 = vadd.f32 %v1741, %v1752
        %v1762 = vadd.f32 %v1742, %v1752
        %v1763 = vadd.f32 %v1743, %v1752
        %v1764 = vadd.f32 %v1744, %v1752
        %v1765 = vadd.f32 %v1745, %v1752
        %v1766 = vadd.f32 %v1746, %v1752
        %vm1767 = vcmp.gt.f32.partialorder %v1754, 0.0
        %vm1768 = vcmp.gt.f32.partialorder %v1755, 0.0
        %vm1769 = vcmp.gt.f32.partialorder %v1756, 0.0
        %vm1770 = vcmp.gt.f32.partialorder %v1757, 0.0
        %vm1771 = vcmp.gt.f32.partialorder %v1758, 0.0
        %vm1772 = vcmp.gt.f32.partialorder %v1759, 0.0
        %vm1773 = vcmp.gt.f32.partialorder %v1760, 0.0
        %vm1774 = vcmp.gt.f32.partialorder %v1761, 0.0
        %vm1775 = vcmp.gt.f32.partialorder %v1762, 0.0
        %vm1776 = vcmp.gt.f32.partialorder %v1763, 0.0
        %vm1777 = vcmp.gt.f32.partialorder %v1764, 0.0
        %vm1778 = vcmp.gt.f32.partialorder %v1765, 0.0
        %vm1779 = vcmp.gt.f32.partialorder %v1766, 0.0
        %v1780 = vmul.f32 %v1754, 0.1
        %v1781 = vmul.f32 %v1755, 0.1
        %v1782 = vmul.f32 %v1756, 0.1
        %v1783 = vmul.f32 %v1757, 0.1
        %v1784 = vmul.f32 %v1758, 0.1
        %v1785 = vmul.f32 %v1759, 0.1
        %v1786 = vmul.f32 %v1760, 0.1
        %v1787 = vmul.f32 %v1761, 0.1
        %v1788 = vmul.f32 %v1762, 0.1
        %v1789 = vmul.f32 %v1763, 0.1
        %v1790 = vmul.f32 %v1764, 0.1
        %v1791 = vmul.f32 %v1765, 0.1
        %v1792 = vmul.f32 %v1766, 0.1
        %v1793 = vsel %vm1767, %v1754, %v1780
        %v1794 = vsel %vm1768, %v1755, %v1781
        %v1795 = vsel %vm1769, %v1756, %v1782
        %v1796 = vsel %vm1770, %v1757, %v1783
        %v1797 = vsel %vm1771, %v1758, %v1784
        %v1798 = vsel %vm1772, %v1759, %v1785
        %v1799 = vsel %vm1773, %v1760, %v1786
        %v1800 = vsel %vm1774, %v1761, %v1787
        %v1801 = vsel %vm1775, %v1762, %v1788
        %v1802 = vsel %vm1776, %v1763, %v1789
        %v1803 = vsel %vm1777, %v1764, %v1790
        %v1804 = vsel %vm1778, %v1765, %v1791
        %v1805 = vsel %vm1779, %v1766, %v1792
        %v1806 = vpack.c.bf16 %v1794, %v1793
        %v1807 = vpack.c.bf16 %v1796, %v1795
        %v1808 = vpack.c.bf16 %v1798, %v1797
        %v1809 = vpack.c.bf16 %v1800, %v1799
        %v1810 = vpack.c.bf16 %v1802, %v1801
        %v1811 = vpack.c.bf16 %v1804, %v1803
        %v1812 = vpack.c.bf16 %v1805, %v1805
        %v1813 = vld [vmem:[%s327] sm:$0xf]
        %v1814 = vld [vmem:[%s327 + $0x4] sm:$0xf]
        %v1817 = vunpack.c.l.b16 %v1813
        %v1818 = vunpack.c.l.b16 %v1814
        %v1819 = vpack.c.b16 %v1818, %v1817
        %vm1821 = vcmask 130048
        %v1823 = vsel %vm1821, %v1806, 0
        %v1826 = vsel %vm1821, %v1807, 0
        %v1829 = vsel %vm1821, %v1808, 0
        %v1832 = vsel %vm1821, %v1809, 0
        %v1835 = vsel %vm1821, %v1810, 0
        %v1838 = vsel %vm1821, %v1811, 0
        %v1841 = vsel %vm1821, %v1812, 0
        %1843 = vmatprep.subr.bf16.mxu0 0
        %1844 = vmatpush1.bf16.msra.mxu0 %v1819
        %1845 = vmatprep.subr.bf16.mxu0 0
        %1846 = vmatpush1.bf16.msra.mxu0 0
        %1847 = vmatprep.subr.bf16.mxu0 0
        %1848 = vmatpush1.bf16.msra.mxu0 0
        %1849 = vmatprep.subr.bf16.mxu0 0
        %1850 = vmatpush1.bf16.msra.mxu0 0
        %1851 = vmatprep.subr.bf16.mxu0 0
        %1852 = vmatpush1.bf16.msra.mxu0 0
        %1853 = vmatprep.subr.bf16.mxu0 0
        %1854 = vmatpush1.bf16.msra.mxu0 0
        %1855 = vmatprep.subr.bf16.mxu0 0
        %1856 = vmatpush1.bf16.msra.mxu0 0
        %1857 = vmatprep.subr.bf16.mxu0 0
        %1858 = vmatpush1.bf16.msra.mxu0 0
        %1859 = vmatprep.subr.bf16.mxu0 0
        %1860 = vmatpush1.bf16.msra.mxu0 0
        %1861 = vmatprep.subr.bf16.mxu0 0
        %1862 = vmatpush1.bf16.msra.mxu0 0
        %1863 = vmatprep.subr.bf16.mxu0 0
        %1864 = vmatpush1.bf16.msra.mxu0 0
        %1865 = vmatprep.subr.bf16.mxu0 0
        %1866 = vmatpush1.bf16.msra.mxu0 0
        %1867 = vmatprep.subr.bf16.mxu0 0
        %1868 = vmatpush1.bf16.msra.mxu0 0
        %1869 = vmatprep.subr.bf16.mxu0 0
        %1870 = vmatpush1.bf16.msra.mxu0 0
        %1871 = vmatprep.subr.bf16.mxu0 0
        %1872 = vmatpush1.bf16.msra.mxu0 0
        %1873 = vmatprep.subr.bf16.mxu0 0
        %1874 = vmatpush1.bf16.msra.mxu0 0
        %1875 = vmatprep.mubr.bf16.mxu0 0
        %1876 = vmatmul.mubr.bf16.gmra.mrb[0].mxu0 %v1823
        %v1877 = vpop.f32.mrb[0].mxu0
        %v1878 = vadd.f32 0.0, %v1877
        %v1879 = vpop.f32.mrb[0].mxu0
        %v1880 = vpop.f32.mrb[0].mxu0
        %v1881 = vadd.f32 0.0, %v1880
        %v1882 = vpop.f32.mrb[0].mxu0
        %1883 = vmatprep.mubr.bf16.mxu0 0
        %1884 = vmatmul.mubr.bf16.gmra.mrb[0].mxu0 %v1826
        %v1885 = vpop.f32.mrb[0].mxu0
        %v1886 = vadd.f32 0.0, %v1885
        %v1887 = vpop.f32.mrb[0].mxu0
        %v1888 = vpop.f32.mrb[0].mxu0
        %v1889 = vadd.f32 0.0, %v1888
        %v1890 = vpop.f32.mrb[0].mxu0
        %1891 = vmatprep.mubr.bf16.mxu0 0
        %1892 = vmatmul.mubr.bf16.gmra.mrb[0].mxu0 %v1829
        %v1893 = vpop.f32.mrb[0].mxu0
        %v1894 = vadd.f32 0.0, %v1893
        %v1895 = vpop.f32.mrb[0].mxu0
        %v1896 = vpop.f32.mrb[0].mxu0
        %v1897 = vadd.f32 0.0, %v1896
        %v1898 = vpop.f32.mrb[0].mxu0
        %1899 = vmatprep.mubr.bf16.mxu0 0
        %1900 = vmatmul.mubr.bf16.gmra.mrb[0].mxu0 %v1832
        %v1901 = vpop.f32.mrb[0].mxu0
        %v1902 = vadd.f32 0.0, %v1901
        %v1903 = vpop.f32.mrb[0].mxu0
        %v1904 = vpop.f32.mrb[0].mxu0
        %v1905 = vadd.f32 0.0, %v1904
        %v1906 = vpop.f32.mrb[0].mxu0
        %1907 = vmatprep.mubr.bf16.mxu0 0
        %1908 = vmatmul.mubr.bf16.gmra.mrb[0].mxu0 %v1835
        %v1909 = vpop.f32.mrb[0].mxu0
        %v1910 = vadd.f32 0.0, %v1909
        %v1911 = vpop.f32.mrb[0].mxu0
        %v1912 = vpop.f32.mrb[0].mxu0
        %v1913 = vadd.f32 0.0, %v1912
        %v1914 = vpop.f32.mrb[0].mxu0
        %1915 = vmatprep.mubr.bf16.mxu0 0
        %1916 = vmatmul.mubr.bf16.gmra.mrb[0].mxu0 %v1838
        %v1917 = vpop.f32.mrb[0].mxu0
        %v1918 = vadd.f32 0.0, %v1917
        %v1919 = vpop.f32.mrb[0].mxu0
        %v1920 = vpop.f32.mrb[0].mxu0
        %v1921 = vadd.f32 0.0, %v1920
        %v1922 = vpop.f32.mrb[0].mxu0
        %1923 = vmatprep.mubr.bf16.mxu0 0
        %1924 = vmatmul.mubr.bf16.gmra.mrb[0].mxu0 %v1841
        %v1925 = vpop.f32.mrb[0].mxu0
        %v1926 = vadd.f32 0.0, %v1925
        %v1927 = vpop.f32.mrb[0].mxu0
        %v1928 = vpop.f32.mrb[0].mxu0
        %v1929 = vpop.f32.mrb[0].mxu0
        %1930 = vdwg.mxu0
        %p1931 = scmp.eq.s32.totalorder %s25, 0
        // Predicated region
        $region45: #{tpu_custom_call.1} parent=43 // pred_check
          %p1932 = pneg %p1931
        $region46: #{tpu_custom_call.1} parent=43 // pred_check_branch
          %1934 = sbr.rel (%p1932) target = $region48
        $region47: #{tpu_custom_call.1} parent=43 // pred_region
          %v1935 = vld [vmem:[%s5] sm:$0x1]
          %v1937 = vlaneseq
          %v1938 = vshrl.u32 %v1937, 7
          %v1939 = vsub.s32 0, %v1938
          %v1940 = vrot.slane %v1935, %v1939
          %v1942 = vadd.f32 %v1878, %v1940
          %v1943 = vadd.f32 %v1881, %v1940
          %v1944 = vadd.f32 %v1886, %v1940
          %v1945 = vadd.f32 %v1889, %v1940
          %v1946 = vadd.f32 %v1894, %v1940
          %v1947 = vadd.f32 %v1897, %v1940
          %v1948 = vadd.f32 %v1902, %v1940
          %v1949 = vadd.f32 %v1905, %v1940
          %v1950 = vadd.f32 %v1910, %v1940
          %v1951 = vadd.f32 %v1913, %v1940
          %v1952 = vadd.f32 %v1918, %v1940
          %v1953 = vadd.f32 %v1921, %v1940
          %v1954 = vadd.f32 %v1926, %v1940
          %1955 = vst [vmem:[%s307] sm:$0xff] %v1942
          %1956 = vst [vmem:[%s307 + $0x8] sm:$0xff] %v1943
          %1957 = vst [vmem:[%s307 + $0x10] sm:$0xff] %v1944
          %1958 = vst [vmem:[%s307 + $0x18] sm:$0xff] %v1945
          %1959 = vst [vmem:[%s307 + $0x20] sm:$0xff] %v1946
          %1960 = vst [vmem:[%s307 + $0x28] sm:$0xff] %v1947
          %1961 = vst [vmem:[%s307 + $0x30] sm:$0xff] %v1948
          %1962 = vst [vmem:[%s307 + $0x38] sm:$0xff] %v1949
          %1963 = vst [vmem:[%s307 + $0x40] sm:$0xff] %v1950
          %1964 = vst [vmem:[%s307 + $0x48] sm:$0xff] %v1951
          %1965 = vst [vmem:[%s307 + $0x50] sm:$0xff] %v1952
          %1966 = vst [vmem:[%s307 + $0x58] sm:$0xff] %v1953
          %1967 = vst [vmem:[%s307 + $0x60] sm:$0xff] %v1954
        $region48: #{tpu_custom_call.1} parent=43 // pred_fallthru
          _
        %p1968 = scmp.gt.s32.totalorder %s25, 0
        // Predicated region
        $region49: #{tpu_custom_call.1} parent=43 // pred_check
          %p1969 = pneg %p1968
        $region50: #{tpu_custom_call.1} parent=43 // pred_check_branch
          %1971 = sbr.rel (%p1969) target = $region52
        $region51: #{tpu_custom_call.1} parent=43 // pred_region
          %v1972 = vld [vmem:[%s307] sm:$0xff]
          %v1973 = vld [vmem:[%s307 + $0x8] sm:$0xff]
          %v1974 = vld [vmem:[%s307 + $0x10] sm:$0xff]
          %v1975 = vld [vmem:[%s307 + $0x18] sm:$0xff]
          %v1976 = vld [vmem:[%s307 + $0x20] sm:$0xff]
          %v1977 = vld [vmem:[%s307 + $0x28] sm:$0xff]
          %v1978 = vld [vmem:[%s307 + $0x30] sm:$0xff]
          %v1979 = vld [vmem:[%s307 + $0x38] sm:$0xff]
          %v1980 = vld [vmem:[%s307 + $0x40] sm:$0xff]
          %v1981 = vld [vmem:[%s307 + $0x48] sm:$0xff]
          %v1982 = vld [vmem:[%s307 + $0x50] sm:$0xff]
          %v1983 = vld [vmem:[%s307 + $0x58] sm:$0xff]
          %v1984 = vld [vmem:[%s307 + $0x60] sm:$0xff]
          %v1985 = vadd.f32 %v1972, %v1878
          %v1986 = vadd.f32 %v1973, %v1881
          %v1987 = vadd.f32 %v1974, %v1886
          %v1988 = vadd.f32 %v1975, %v1889
          %v1989 = vadd.f32 %v1976, %v1894
          %v1990 = vadd.f32 %v1977, %v1897
          %v1991 = vadd.f32 %v1978, %v1902
          %v1992 = vadd.f32 %v1979, %v1905
          %v1993 = vadd.f32 %v1980, %v1910
          %v1994 = vadd.f32 %v1981, %v1913
          %v1995 = vadd.f32 %v1982, %v1918
          %v1996 = vadd.f32 %v1983, %v1921
          %v1997 = vadd.f32 %v1984, %v1926
          %1998 = vst [vmem:[%s307] sm:$0xff] %v1985
          %1999 = vst [vmem:[%s307 + $0x8] sm:$0xff] %v1986
          %2000 = vst [vmem:[%s307 + $0x10] sm:$0xff] %v1987
          %2001 = vst [vmem:[%s307 + $0x18] sm:$0xff] %v1988
          %2002 = vst [vmem:[%s307 + $0x20] sm:$0xff] %v1989
          %2003 = vst [vmem:[%s307 + $0x28] sm:$0xff] %v1990
          %2004 = vst [vmem:[%s307 + $0x30] sm:$0xff] %v1991
          %2005 = vst [vmem:[%s307 + $0x38] sm:$0xff] %v1992
          %2006 = vst [vmem:[%s307 + $0x40] sm:$0xff] %v1993
          %2007 = vst [vmem:[%s307 + $0x48] sm:$0xff] %v1994
          %2008 = vst [vmem:[%s307 + $0x50] sm:$0xff] %v1995
          %2009 = vst [vmem:[%s307 + $0x58] sm:$0xff] %v1996
          %2010 = vst [vmem:[%s307 + $0x60] sm:$0xff] %v1997
        $region52: #{tpu_custom_call.1} parent=43 // pred_fallthru
          _
        %s2011 = sand.u32 %s191, 1
        %s2012 = scalar_lea.sflag [#allocation3], %s2011
        %s2013 = sand.u32 %s191, 1
        %s2014 = smul.addr %s2013, 104
        %s2015 = scalar_lea.vmem [#allocation2], %s2014
        // Predicated region
        $region53: #{tpu_custom_call.1} parent=43 // pred_check
          %p2016 = pneg %p201
        $region54: #{tpu_custom_call.1} parent=43 // pred_check_branch
          %2018 = sbr.rel (%p2016) target = $region56
        $region55: #{tpu_custom_call.1} parent=43 // pred_region
          %s2020 = ssub.s32 1664, 1664
          %2021 = vsyncadd %s2012, %s2020
          %s2022 = smul.addr %s24, 13
          %s2023 = smul.addr %s2022, 128
          %s2024 = scalar_lea.hbm %s6, %s2023
          %s2025 = sshll.u32 %s2015, 4
          %s2026 = int_to_ptr.vmem [resolvable:$true] %s2025
          %2031 = dma.vmem_to_hbm [thread:$0]  %s2026, 1664, %s2024, %s2012, 128, 128, 8
        $region56: #{tpu_custom_call.1} parent=43 // pred_fallthru
          _
      $region44: #{tpu_custom_call.1} parent=5 // pred_fallthru
        _
      %p2032 = scmp.le.s32.totalorder 2, %s15
      // Predicated region
      $region57: #{tpu_custom_call.1} parent=5 // pred_check
        %p2033 = pneg %p2032
      $region58: #{tpu_custom_call.1} parent=5 // pred_check_branch
        %2035 = sbr.rel (%p2033) target = $region60
      $region59: #{tpu_custom_call.1} parent=5 // pred_region
        %s2036 = ssub.s32 %s15, 2
        // Predicated region
        $region61: #{tpu_custom_call.1} parent=59 // pred_check
          %p2037 = pneg %p207
        $region62: #{tpu_custom_call.1} parent=59 // pred_check_branch
          %2039 = sbr.rel (%p2037) target = $region64
        $region63: #{tpu_custom_call.1} parent=59 // pred_region
          %s2040 = sand.u32 %s192, 1
          %s2041 = scalar_lea.sflag [#allocation3], %s2040
          %s2042 = sand.u32 %s192, 1
          %s2043 = smul.addr %s2042, 104
          %s2044 = scalar_lea.vmem [#allocation2], %s2043
          %2045 = dma.done %s2041, 1664
        $region64: #{tpu_custom_call.1} parent=59 // pred_fallthru
          _
      $region60: #{tpu_custom_call.1} parent=5 // pred_fallthru
        _
    $region6: #{tpu_custom_call.1} parent=1 // loop_footer
      %s19 = sadd.s32 1, %s15
    $region7: #{tpu_custom_call.1} parent=1 // loop_footer_branch
      %14 = sbr.rel target = $region3
    $region8: #{tpu_custom_call.1} parent=1 // loop_exit
      _
    %2046 = vsyncpa [#allocation3], 1
    %s2047 = scalar_lea.sflag [#allocation3], 1
    %2048 = vsyncpa %s2047, 1

</llo_original>
